<compile_context>
chip_gen: v6e
topology: v6e:2x2x1
jax: 0.10.0
libtpu: 0.0.40
codegen_flags: <defaults>
</compile_context>

<pallas_src>
import math

import jax
import jax.numpy as jnp
from jax.experimental import pallas as pl
from jax.experimental.pallas import tpu as pltpu


# ---------------------------------------------------------------------------
# Pallas kernel: fused Hermitian fold + bias + lane-dense packing
#   y_ref  : (U, 2M, M) f32   Y_u = [tr_u^T ; -ti_u^T], temp_u = P1_u @ E_u^{-1}
#   p3_ref : (U, 2, M, M) f32 raw params3 (real, imag)
#   out_ref: (M, 2*U*M) f32   lane-dense slab, column block (c*U + u) = W_{c,u}
# ---------------------------------------------------------------------------
def _w_unfold_kernel(y_ref, p3_ref, out_ref):
    U = p3_ref.shape[0]
    M = p3_ref.shape[2]
    re_pieces = []
    im_pieces = []
    # Static unroll over users: U is tiny and the kernel is gridless, so the
    # trace stays small; every transpose below is an (M,M) XLU op (idle slot).
    for u in range(U):
        trT = y_ref[u, :M, :]         # tr_u^T                    (M, M)
        nTiT = y_ref[u, M:, :]        # -ti_u^T                   (M, M)
        p3r = p3_ref[u, 0, :, :]
        p3i = p3_ref[u, 1, :, :]
        # W_r = (tr + tr^T)/2 + (p3r + p3r^T)/2      (symmetric part)
        # W_i = (ti - ti^T)/2 + (p3i - p3i^T)/2      (antisymmetric part)
        wr = 0.5 * (trT + trT.T) + 0.5 * (p3r + p3r.T)
        wi = 0.5 * (nTiT - nTiT.T) + 0.5 * (p3i - p3i.T)
        re_pieces.append(wr)
        im_pieces.append(wi)
    # One lane-dense (M, 2*U*M) store instead of 2U narrow 8-lane masked stores.
    out_ref[...] = jnp.concatenate(re_pieces + im_pieces, axis=-1)


# ---------------------------------------------------------------------------
# Forward (one jit around everything)
# ---------------------------------------------------------------------------
@jax.jit
def w_unfolding_forward(params1, params3, E):
    """params1, params3: (U, 2, M, M); E: (2, M, M, U) -> W_out: (2, M, M, U)."""
    U, _, M, _ = params1.shape
    f32 = jnp.float32

    # Build A = R(E_u)^T directly from the (2, M, M, U) input (single transpose
    # per part, no intermediate Er/Ei materialization):
    #   R(E)   = [[Er, -Ei], [Ei, Er]]   =>   R(E)^T = [[Er^T, Ei^T], [-Ei^T, Er^T]]
    ErT = jnp.transpose(E[0], (2, 1, 0)).astype(f32)             # (U, M, M)
    EiT = jnp.transpose(E[1], (2, 1, 0)).astype(f32)             # (U, M, M)
    A = jnp.concatenate(
        [jnp.concatenate([ErT, EiT], axis=-1),
         jnp.concatenate([-EiT, ErT], axis=-1)], axis=-2)        # (U, 2M, 2M)

    # RHS = first M columns of R(P1_u)^T = [P1r^T ; -P1i^T]
    P1rT = jnp.swapaxes(params1[:, 0].astype(f32), -1, -2)       # (U, M, M)
    P1iT = jnp.swapaxes(params1[:, 1].astype(f32), -1, -2)       # (U, M, M)
    rhs = jnp.concatenate([P1rT, -P1iT], axis=-2)                # (U, 2M, M)

    # TODO(synk): LU-based linear solve has no Pallas primitive; one batched XLA
    # solve replaces the previous inv + matmul (the P1 @ E^{-1} product is folded
    # into the solve RHS).
    Y = jnp.linalg.solve(A, rhs)                                 # (U, 2M, M)

    out = pl.pallas_call(
        _w_unfold_kernel,
        out_shape=jax.ShapeDtypeStruct((M, 2 * U * M), jnp.float32),
        # Single whole-batch resident VMEM block (no grid): one launch, one DMA
        # per operand; everything fits in a few KiB of VMEM at these shapes.
        in_specs=[pl.BlockSpec(memory_space=pltpu.MemorySpace.VMEM)] * 2,
        out_specs=pl.BlockSpec(memory_space=pltpu.MemorySpace.VMEM),
    )(Y, params3.astype(f32))

    # Unpack the lane-dense slab -> (2, M, M, U)  (layout plumbing inside the jit)
    return jnp.transpose(out.reshape(M, 2, U, M), (1, 0, 3, 2))


# ---------------------------------------------------------------------------
# Module wrapper (parameter init mirrors torch.nn.init.xavier_uniform_)
# ---------------------------------------------------------------------------
def _xavier_uniform(key, shape, gain):
    receptive = 1
    for s in shape[2:]:
        receptive *= s
    fan_in = shape[1] * receptive
    fan_out = shape[0] * receptive
    bound = gain * math.sqrt(6.0 / (fan_in + fan_out))
    return jax.random.uniform(key, shape, jnp.float32, minval=-bound, maxval=bound)


class WUnfolding:
    """JAX/Pallas port of the PyTorch W_unfolding module."""

    def __init__(self, M, N, num_users, key):
        assert M == N, "W_unfolding writes an (M, M) Hermitian block per user"
        self.M, self.N, self.num_users = M, N, num_users
        gain = 0.02                                    # 'power' in the reference
        ks = jax.random.split(key, 4 * num_users)
        p1 = [_xavier_uniform(ks[4 * i + 0], (2, M, M), gain) for i in range(num_users)]
        p2 = [_xavier_uniform(ks[4 * i + 1], (2, M, M), gain) for i in range(num_users)]
        p3 = [_xavier_uniform(ks[4 * i + 2], (2, M, M), gain) for i in range(num_users)]
        p4 = [_xavier_uniform(ks[4 * i + 3], (2, M, N), gain) for i in range(num_users)]
        self.params1 = jnp.stack(p1)                   # (U, 2, M, M)
        self.params2 = jnp.stack(p2)                   # unused in forward (parity only)
        self.params3 = jnp.stack(p3)
        self.params4 = jnp.stack(p4)                   # unused in forward (parity only)

    def forward(self, E):
        return w_unfolding_forward(self.params1, self.params3, E)


# ---------------------------------------------------------------------------
# Pure-JAX reference (mirrors the PyTorch loop) for correctness checking
# ---------------------------------------------------------------------------
def _reference_forward(p1, p3, E):
    def cmul(A, B):
        return jnp.stack([A[0] @ B[0] - A[1] @ B[1],
                          A[0] @ B[1] + A[1] @ B[0]])

    def cinv(A):
        R, I = A[0], A[1]
        n = R.shape[0]
        blk = jnp.concatenate([jnp.concatenate([R, -I], axis=1),
                               jnp.concatenate([I, R], axis=1)], axis=0)
        bi = jnp.linalg.inv(blk)
        return jnp.stack([bi[:n, :n], bi[n:, :n]])

    def conjT(A):
        return jnp.stack([A[0].T, -A[1].T])

    outs = []
    for i in range(E.shape[-1]):
        temp = cmul(p1[i], cinv(E[:, :, :, i])) + p3[i]
        outs.append((temp + conjT(temp)) / 2.0)
    return jnp.stack(outs, axis=-1)


# ---------------------------------------------------------------------------
# Demo
# ---------------------------------------------------------------------------
if __name__ == "__main__":
    M = N = 8
    num_users = 4

    key = jax.random.PRNGKey(0)
    key, pkey, ekey = jax.random.split(key, 3)
    layer = WUnfolding(M, N, num_users, pkey)

    # Well-conditioned complex E (in WMMSE, E ~ I - U^H H P, i.e. near identity).
    kr, ki = jax.random.split(ekey)
    E_r = (jnp.eye(M, dtype=jnp.float32)[:, :, None]
           + 0.1 * jax.random.normal(kr, (M, M, num_users), jnp.float32))
    E_i = 0.1 * jax.random.normal(ki, (M, M, num_users), jnp.float32)
    E = jnp.stack([E_r, E_i])                          # (2, M, M, num_users)

    W = layer.forward(E)
    jax.block_until_ready(W)

    assert W.shape == (2, M, N, num_users)
    assert bool(jnp.all(jnp.isfinite(W)))

    W_ref = _reference_forward(layer.params1, layer.params3, E)
    assert bool(jnp.allclose(W, W_ref, atol=5e-4, rtol=1e-3)), (
        f"mismatch vs reference: {float(jnp.max(jnp.abs(W - W_ref)))}")

    print("KERNEL_OK")
</pallas_src>

<mosaic_0001>
module attributes {stable_mosaic.version = 11 : i64} {
  func.func @_w_unfold_kernel(%arg0: memref<4x16x8xf32, #tpu.memory_space<vmem>>, %arg1: memref<4x2x8x8xf32, #tpu.memory_space<vmem>>, %arg2: memref<8x64xf32, #tpu.memory_space<vmem>>) attributes {dimension_semantics = [], scalar_prefetch = 0 : i64, scratch_operands = 0 : i64, tpu.core_type = #tpu.core_type<tc>} {
    %c0 = arith.constant 0 : index
    %c0_0 = arith.constant 0 : index
    %c0_1 = arith.constant 0 : index
    %0 = vector.load %arg0[%c0, %c0_0, %c0_1] : memref<4x16x8xf32, #tpu.memory_space<vmem>>, vector<1x8x8xf32>
    %1 = vector.shape_cast %0 : vector<1x8x8xf32> to vector<8x8xf32>
    %c0_2 = arith.constant 0 : index
    %c8 = arith.constant 8 : index
    %c0_3 = arith.constant 0 : index
    %2 = vector.load %arg0[%c0_2, %c8, %c0_3] : memref<4x16x8xf32, #tpu.memory_space<vmem>>, vector<1x8x8xf32>
    %3 = vector.shape_cast %2 : vector<1x8x8xf32> to vector<8x8xf32>
    %c0_4 = arith.constant 0 : index
    %c0_5 = arith.constant 0 : index
    %c0_6 = arith.constant 0 : index
    %c0_7 = arith.constant 0 : index
    %4 = vector.load %arg1[%c0_4, %c0_5, %c0_6, %c0_7] : memref<4x2x8x8xf32, #tpu.memory_space<vmem>>, vector<1x1x8x8xf32>
    %5 = vector.shape_cast %4 : vector<1x1x8x8xf32> to vector<8x8xf32>
    %c0_8 = arith.constant 0 : index
    %c1 = arith.constant 1 : index
    %c0_9 = arith.constant 0 : index
    %c0_10 = arith.constant 0 : index
    %6 = vector.load %arg1[%c0_8, %c1, %c0_9, %c0_10] : memref<4x2x8x8xf32, #tpu.memory_space<vmem>>, vector<1x1x8x8xf32>
    %7 = vector.shape_cast %6 : vector<1x1x8x8xf32> to vector<8x8xf32>
    %8 = tpu.transpose %1, [1, 0] : vector<8x8xf32> -> vector<8x8xf32>
    %9 = arith.addf %1, %8 : vector<8x8xf32>
    %cst = arith.constant 5.000000e-01 : f32
    %10 = vector.broadcast %cst : f32 to vector<8x8xf32>
    %11 = arith.mulf %10, %9 : vector<8x8xf32>
    %12 = tpu.transpose %5, [1, 0] : vector<8x8xf32> -> vector<8x8xf32>
    %13 = arith.addf %5, %12 : vector<8x8xf32>
    %cst_11 = arith.constant 5.000000e-01 : f32
    %14 = vector.broadcast %cst_11 : f32 to vector<8x8xf32>
    %15 = arith.mulf %14, %13 : vector<8x8xf32>
    %16 = arith.addf %11, %15 : vector<8x8xf32>
    %17 = tpu.transpose %3, [1, 0] : vector<8x8xf32> -> vector<8x8xf32>
    %18 = arith.subf %3, %17 : vector<8x8xf32>
    %cst_12 = arith.constant 5.000000e-01 : f32
    %19 = vector.broadcast %cst_12 : f32 to vector<8x8xf32>
    %20 = arith.mulf %19, %18 : vector<8x8xf32>
    %21 = tpu.transpose %7, [1, 0] : vector<8x8xf32> -> vector<8x8xf32>
    %22 = arith.subf %7, %21 : vector<8x8xf32>
    %cst_13 = arith.constant 5.000000e-01 : f32
    %23 = vector.broadcast %cst_13 : f32 to vector<8x8xf32>
    %24 = arith.mulf %23, %22 : vector<8x8xf32>
    %25 = arith.addf %20, %24 : vector<8x8xf32>
    %c1_14 = arith.constant 1 : index
    %c0_15 = arith.constant 0 : index
    %c0_16 = arith.constant 0 : index
    %26 = vector.load %arg0[%c1_14, %c0_15, %c0_16] : memref<4x16x8xf32, #tpu.memory_space<vmem>>, vector<1x8x8xf32>
    %27 = vector.shape_cast %26 : vector<1x8x8xf32> to vector<8x8xf32>
    %c1_17 = arith.constant 1 : index
    %c8_18 = arith.constant 8 : index
    %c0_19 = arith.constant 0 : index
    %28 = vector.load %arg0[%c1_17, %c8_18, %c0_19] : memref<4x16x8xf32, #tpu.memory_space<vmem>>, vector<1x8x8xf32>
    %29 = vector.shape_cast %28 : vector<1x8x8xf32> to vector<8x8xf32>
    %c1_20 = arith.constant 1 : index
    %c0_21 = arith.constant 0 : index
    %c0_22 = arith.constant 0 : index
    %c0_23 = arith.constant 0 : index
    %30 = vector.load %arg1[%c1_20, %c0_21, %c0_22, %c0_23] : memref<4x2x8x8xf32, #tpu.memory_space<vmem>>, vector<1x1x8x8xf32>
    %31 = vector.shape_cast %30 : vector<1x1x8x8xf32> to vector<8x8xf32>
    %c1_24 = arith.constant 1 : index
    %c1_25 = arith.constant 1 : index
    %c0_26 = arith.constant 0 : index
    %c0_27 = arith.constant 0 : index
    %32 = vector.load %arg1[%c1_24, %c1_25, %c0_26, %c0_27] : memref<4x2x8x8xf32, #tpu.memory_space<vmem>>, vector<1x1x8x8xf32>
    %33 = vector.shape_cast %32 : vector<1x1x8x8xf32> to vector<8x8xf32>
    %34 = tpu.transpose %27, [1, 0] : vector<8x8xf32> -> vector<8x8xf32>
    %35 = arith.addf %27, %34 : vector<8x8xf32>
    %cst_28 = arith.constant 5.000000e-01 : f32
    %36 = vector.broadcast %cst_28 : f32 to vector<8x8xf32>
    %37 = arith.mulf %36, %35 : vector<8x8xf32>
    %38 = tpu.transpose %31, [1, 0] : vector<8x8xf32> -> vector<8x8xf32>
    %39 = arith.addf %31, %38 : vector<8x8xf32>
    %cst_29 = arith.constant 5.000000e-01 : f32
    %40 = vector.broadcast %cst_29 : f32 to vector<8x8xf32>
    %41 = arith.mulf %40, %39 : vector<8x8xf32>
    %42 = arith.addf %37, %41 : vector<8x8xf32>
    %43 = tpu.transpose %29, [1, 0] : vector<8x8xf32> -> vector<8x8xf32>
    %44 = arith.subf %29, %43 : vector<8x8xf32>
    %cst_30 = arith.constant 5.000000e-01 : f32
    %45 = vector.broadcast %cst_30 : f32 to vector<8x8xf32>
    %46 = arith.mulf %45, %44 : vector<8x8xf32>
    %47 = tpu.transpose %33, [1, 0] : vector<8x8xf32> -> vector<8x8xf32>
    %48 = arith.subf %33, %47 : vector<8x8xf32>
    %cst_31 = arith.constant 5.000000e-01 : f32
    %49 = vector.broadcast %cst_31 : f32 to vector<8x8xf32>
    %50 = arith.mulf %49, %48 : vector<8x8xf32>
    %51 = arith.addf %46, %50 : vector<8x8xf32>
    %c2 = arith.constant 2 : index
    %c0_32 = arith.constant 0 : index
    %c0_33 = arith.constant 0 : index
    %52 = vector.load %arg0[%c2, %c0_32, %c0_33] : memref<4x16x8xf32, #tpu.memory_space<vmem>>, vector<1x8x8xf32>
    %53 = vector.shape_cast %52 : vector<1x8x8xf32> to vector<8x8xf32>
    %c2_34 = arith.constant 2 : index
    %c8_35 = arith.constant 8 : index
    %c0_36 = arith.constant 0 : index
    %54 = vector.load %arg0[%c2_34, %c8_35, %c0_36] : memref<4x16x8xf32, #tpu.memory_space<vmem>>, vector<1x8x8xf32>
    %55 = vector.shape_cast %54 : vector<1x8x8xf32> to vector<8x8xf32>
    %c2_37 = arith.constant 2 : index
    %c0_38 = arith.constant 0 : index
    %c0_39 = arith.constant 0 : index
    %c0_40 = arith.constant 0 : index
    %56 = vector.load %arg1[%c2_37, %c0_38, %c0_39, %c0_40] : memref<4x2x8x8xf32, #tpu.memory_space<vmem>>, vector<1x1x8x8xf32>
    %57 = vector.shape_cast %56 : vector<1x1x8x8xf32> to vector<8x8xf32>
    %c2_41 = arith.constant 2 : index
    %c1_42 = arith.constant 1 : index
    %c0_43 = arith.constant 0 : index
    %c0_44 = arith.constant 0 : index
    %58 = vector.load %arg1[%c2_41, %c1_42, %c0_43, %c0_44] : memref<4x2x8x8xf32, #tpu.memory_space<vmem>>, vector<1x1x8x8xf32>
    %59 = vector.shape_cast %58 : vector<1x1x8x8xf32> to vector<8x8xf32>
    %60 = tpu.transpose %53, [1, 0] : vector<8x8xf32> -> vector<8x8xf32>
    %61 = arith.addf %53, %60 : vector<8x8xf32>
    %cst_45 = arith.constant 5.000000e-01 : f32
    %62 = vector.broadcast %cst_45 : f32 to vector<8x8xf32>
    %63 = arith.mulf %62, %61 : vector<8x8xf32>
    %64 = tpu.transpose %57, [1, 0] : vector<8x8xf32> -> vector<8x8xf32>
    %65 = arith.addf %57, %64 : vector<8x8xf32>
    %cst_46 = arith.constant 5.000000e-01 : f32
    %66 = vector.broadcast %cst_46 : f32 to vector<8x8xf32>
    %67 = arith.mulf %66, %65 : vector<8x8xf32>
    %68 = arith.addf %63, %67 : vector<8x8xf32>
    %69 = tpu.transpose %55, [1, 0] : vector<8x8xf32> -> vector<8x8xf32>
    %70 = arith.subf %55, %69 : vector<8x8xf32>
    %cst_47 = arith.constant 5.000000e-01 : f32
    %71 = vector.broadcast %cst_47 : f32 to vector<8x8xf32>
    %72 = arith.mulf %71, %70 : vector<8x8xf32>
    %73 = tpu.transpose %59, [1, 0] : vector<8x8xf32> -> vector<8x8xf32>
    %74 = arith.subf %59, %73 : vector<8x8xf32>
    %cst_48 = arith.constant 5.000000e-01 : f32
    %75 = vector.broadcast %cst_48 : f32 to vector<8x8xf32>
    %76 = arith.mulf %75, %74 : vector<8x8xf32>
    %77 = arith.addf %72, %76 : vector<8x8xf32>
    %c3 = arith.constant 3 : index
    %c0_49 = arith.constant 0 : index
    %c0_50 = arith.constant 0 : index
    %78 = vector.load %arg0[%c3, %c0_49, %c0_50] : memref<4x16x8xf32, #tpu.memory_space<vmem>>, vector<1x8x8xf32>
    %79 = vector.shape_cast %78 : vector<1x8x8xf32> to vector<8x8xf32>
    %c3_51 = arith.constant 3 : index
    %c8_52 = arith.constant 8 : index
    %c0_53 = arith.constant 0 : index
    %80 = vector.load %arg0[%c3_51, %c8_52, %c0_53] : memref<4x16x8xf32, #tpu.memory_space<vmem>>, vector<1x8x8xf32>
    %81 = vector.shape_cast %80 : vector<1x8x8xf32> to vector<8x8xf32>
    %c3_54 = arith.constant 3 : index
    %c0_55 = arith.constant 0 : index
    %c0_56 = arith.constant 0 : index
    %c0_57 = arith.constant 0 : index
    %82 = vector.load %arg1[%c3_54, %c0_55, %c0_56, %c0_57] : memref<4x2x8x8xf32, #tpu.memory_space<vmem>>, vector<1x1x8x8xf32>
    %83 = vector.shape_cast %82 : vector<1x1x8x8xf32> to vector<8x8xf32>
    %c3_58 = arith.constant 3 : index
    %c1_59 = arith.constant 1 : index
    %c0_60 = arith.constant 0 : index
    %c0_61 = arith.constant 0 : index
    %84 = vector.load %arg1[%c3_58, %c1_59, %c0_60, %c0_61] : memref<4x2x8x8xf32, #tpu.memory_space<vmem>>, vector<1x1x8x8xf32>
    %85 = vector.shape_cast %84 : vector<1x1x8x8xf32> to vector<8x8xf32>
    %86 = tpu.transpose %79, [1, 0] : vector<8x8xf32> -> vector<8x8xf32>
    %87 = arith.addf %79, %86 : vector<8x8xf32>
    %cst_62 = arith.constant 5.000000e-01 : f32
    %88 = vector.broadcast %cst_62 : f32 to vector<8x8xf32>
    %89 = arith.mulf %88, %87 : vector<8x8xf32>
    %90 = tpu.transpose %83, [1, 0] : vector<8x8xf32> -> vector<8x8xf32>
    %91 = arith.addf %83, %90 : vector<8x8xf32>
    %cst_63 = arith.constant 5.000000e-01 : f32
    %92 = vector.broadcast %cst_63 : f32 to vector<8x8xf32>
    %93 = arith.mulf %92, %91 : vector<8x8xf32>
    %94 = arith.addf %89, %93 : vector<8x8xf32>
    %95 = tpu.transpose %81, [1, 0] : vector<8x8xf32> -> vector<8x8xf32>
    %96 = arith.subf %81, %95 : vector<8x8xf32>
    %cst_64 = arith.constant 5.000000e-01 : f32
    %97 = vector.broadcast %cst_64 : f32 to vector<8x8xf32>
    %98 = arith.mulf %97, %96 : vector<8x8xf32>
    %99 = tpu.transpose %85, [1, 0] : vector<8x8xf32> -> vector<8x8xf32>
    %100 = arith.subf %85, %99 : vector<8x8xf32>
    %cst_65 = arith.constant 5.000000e-01 : f32
    %101 = vector.broadcast %cst_65 : f32 to vector<8x8xf32>
    %102 = arith.mulf %101, %100 : vector<8x8xf32>
    %103 = arith.addf %98, %102 : vector<8x8xf32>
    %104 = tpu.concatenate %16, %42, %68, %94, %25, %51, %77, %103 in 1 : vector<8x8xf32>, vector<8x8xf32>, vector<8x8xf32>, vector<8x8xf32>, vector<8x8xf32>, vector<8x8xf32>, vector<8x8xf32>, vector<8x8xf32> -> vector<8x64xf32>
    %c0_66 = arith.constant 0 : index
    %c0_67 = arith.constant 0 : index
    %105 = vector.load %arg2[%c0_66, %c0_67] : memref<8x64xf32, #tpu.memory_space<vmem>>, vector<8x64xf32>
    tpu.vector_store %arg2[%c0_66, %c0_67], %104 {strides = array<i32>} : memref<8x64xf32, #tpu.memory_space<vmem>>, vector<8x64xf32>,
    return
  }
}

</mosaic_0001>

<llo_original>
// kernel: custom-call.8
$region0: #{custom-call.8}
  %s0 = inlined_call_operand.vmem [shape: f32[4,16,16], index: 0, kind: input, shape index: {}]
  %s1 = inlined_call_operand.vmem [shape: f32[4,16,16], index: 1, kind: output, shape index: {0}]
  %s2 = inlined_call_operand.hbm [shape: s32[4,16], index: 2, kind: output, shape index: {1}]
  %s3 = inlined_call_operand.vmem [shape: s32[4,16], index: 3, kind: output, shape index: {2}]
  %4 = xla_tuple %s1, %s2, %s3
  $region1: #{custom-call.8} parent=0
    #allocation0 [shape = 'u8[16384]{0}', space=vmem, size = 0x4000, scoped, tag = 'operand span for operand 0']
    #allocation1 [shape = 'u8[16384]{0}', space=vmem, size = 0x4000, scoped, tag = 'operand span for operand 1']
    #allocation2 [shape = 'u8[4096]{0}', space=vmem, size = 0x1000, scoped, tag = 'operand span for operand 2']
    #allocation3 [shape = 'u8[4096]{0}', space=vmem, size = 0x1000, scoped, tag = 'packed  for operand 2']
    #allocation4 [shape = 's32[2]{0}', space=sflag, size = 0x8, scoped, tag = 'scoped memory for custom-call.8']
    #allocation5 [shape = 'u8[4096]{0}', space=vmem, size = 0x1000, scoped, tag = 'operand span for operand 3']
    #allocation6 [shape = 'u8[4096]{0}', space=vmem, size = 0x1000, scoped, tag = 'packed  for operand 3']
    %5 = vsyncpa [#allocation4], 0
    %s6 = scalar_lea.sflag [#allocation4], 1
    %7 = vsyncpa %s6, 0
    loop: start=0, step=1, limit=6
    $region2: #{custom-call.8} parent=1 // loop_pre_header
      _
    $region3: #{custom-call.8} parent=1 // loop_header
      %s9 = sphi 0, %s13
      %p10 = scmp.ge.s32.totalorder %s9, 6
      %s21 = sphi 0, %s23
      %s24 = sphi 0, %s21
      %s25 = sphi 0, %s24
      %s41 = sphi 0, %s25
      %s49 = sphi 0, %s51
      %s52 = sphi 0, %s49
      %s53 = sphi 0, %s52
      %s69 = sphi 0, %s53
    $region4: #{custom-call.8} parent=1 // loop_header_branch
      %12 = sbr.rel (%p10) target = $region8
    $region5: #{custom-call.8} parent=1 // loop_body
      %s14 = ssub.s32 %s9, 1
      %s15 = ssub.s32 %s9, 2
      %s16 = sadd.s32 %s9, 1
      %s17 = sshrl.u32 %s9, 3
      %s18 = sshrl.u32 %s16, 3
      %s19 = ssub.s32 %s17, %s18
      %p20 = scmp.eq.s32.totalorder %s19, 0
      %s22 = sadd.s32 %s21, 1
      %s23 = scalar_select %p20, %s21, %s22
      %p26 = pneg %p20
      %p27 = scmp.eq.s32.totalorder %s9, 3
      %p28 = por %p26, %p27
      %p29 = scmp.ne.s32.totalorder %s21, %s24
      %p30 = scmp.eq.s32.totalorder %s9, 0
      %p31 = por %p29, %p30
      %p32 = scmp.ne.s32.totalorder %s21, %s24
      %p33 = scmp.eq.s32.totalorder %s14, 3
      %p34 = por %p32, %p33
      %p35 = scmp.ne.s32.totalorder %s24, %s25
      %p36 = scmp.eq.s32.totalorder %s14, 0
      %p37 = por %p35, %p36
      %p38 = scmp.ne.s32.totalorder %s24, %s25
      %p39 = scmp.eq.s32.totalorder %s15, 3
      %p40 = por %p38, %p39
      %p42 = scmp.ne.s32.totalorder %s25, %s41
      %p43 = scmp.eq.s32.totalorder %s15, 0
      %p44 = por %p42, %p43
      %s45 = sshrl.u32 %s9, 3
      %s46 = sshrl.u32 %s16, 3
      %s47 = ssub.s32 %s45, %s46
      %p48 = scmp.eq.s32.totalorder %s47, 0
      %s50 = sadd.s32 %s49, 1
      %s51 = scalar_select %p48, %s49, %s50
      %p54 = pneg %p48
      %p55 = scmp.eq.s32.totalorder %s9, 3
      %p56 = por %p54, %p55
      %p57 = scmp.ne.s32.totalorder %s49, %s52
      %p58 = scmp.eq.s32.totalorder %s9, 0
      %p59 = por %p57, %p58
      %p60 = scmp.ne.s32.totalorder %s49, %s52
      %p61 = scmp.eq.s32.totalorder %s14, 3
      %p62 = por %p60, %p61
      %p63 = scmp.ne.s32.totalorder %s52, %s53
      %p64 = scmp.eq.s32.totalorder %s14, 0
      %p65 = por %p63, %p64
      %p66 = scmp.ne.s32.totalorder %s52, %s53
      %p67 = scmp.eq.s32.totalorder %s15, 3
      %p68 = por %p66, %p67
      %p70 = scmp.ne.s32.totalorder %s53, %s69
      %p71 = scmp.eq.s32.totalorder %s15, 0
      %p72 = por %p70, %p71
      %p73 = scmp.le.s32.totalorder 1, %s9
      %p74 = scmp.lt.s32.totalorder %s9, 5
      %p75 = pnand %p73, %p74
      %p76 = pneg %p75
      // Predicated region
      $region9: #{custom-call.8} parent=5 // pred_check
        _
      $region10: #{custom-call.8} parent=5 // pred_check_branch
        %78 = sbr.rel (%p75) target = $region12
      $region11: #{custom-call.8} parent=5 // pred_region
        %s79 = ssub.s32 %s9, 1
      $region12: #{custom-call.8} parent=5 // pred_fallthru
        _
      %p80 = scmp.lt.s32.totalorder %s9, 4
      // Predicated region
      $region13: #{custom-call.8} parent=5 // pred_check
        %p81 = pneg %p80
      $region14: #{custom-call.8} parent=5 // pred_check_branch
        %83 = sbr.rel (%p81) target = $region16
      $region15: #{custom-call.8} parent=5 // pred_region
        %s84 = sand.u32 %s9, 1
        %s85 = sand.u32 %s9, 1
        %s86 = smul.addr %s85, 16
        %s87 = scalar_lea.vmem [#allocation0], %s86
        %s88 = smul.addr %s9, 16
        %s89 = scalar_lea.vmem %s0, %s88
        // Predicated region
        $region17: #{custom-call.8} parent=15 // pred_check
          _
        $region18: #{custom-call.8} parent=15 // pred_check_branch
          %91 = sbr.rel (0) target = $region20
        $region19: #{custom-call.8} parent=15 // pred_region
          // Predicated region
          $region21: #{custom-call.8} parent=19 // pred_check
            _
          $region22: #{custom-call.8} parent=19 // pred_check_branch
            %93 = sbr.rel (0) target = $region24
          $region23: #{custom-call.8} parent=19 // pred_region
            loop: start=0, step=1, limit=1
            $region25: #{custom-call.8} parent=23 // loop_pre_header
              _
            $region26: #{custom-call.8} parent=23 // loop_header
              %s95 = sphi 0, %s99
              %p96 = scmp.ge.s32.totalorder %s95, 1
              %s100 = sphi %s89, %s89
              %s101 = sphi %s87, %s87
            $region27: #{custom-call.8} parent=23 // loop_header_branch
              %98 = sbr.rel (%p96) target = $region31
            $region28: #{custom-call.8} parent=23 // loop_body
              %v102 = vld [vmem:[%s100] sm:$0xff]
              %103 = vst [vmem:[%s101] sm:$0xff] %v102
              %v104 = vld [vmem:[%s100 + $0x8] sm:$0xff]
              %105 = vst [vmem:[%s101 + $0x8] sm:$0xff] %v104
            $region29: #{custom-call.8} parent=23 // loop_footer
              %s99 = sadd.s32 1, %s95
            $region30: #{custom-call.8} parent=23 // loop_footer_branch
              %94 = sbr.rel target = $region26
            $region31: #{custom-call.8} parent=23 // loop_exit
              _
          $region24: #{custom-call.8} parent=19 // pred_fallthru
            _
          // Predicated region
          $region32: #{custom-call.8} parent=19 // pred_check
            _
          $region33: #{custom-call.8} parent=19 // pred_check_branch
            %107 = sbr.rel target = $region35
          $region34: #{custom-call.8} parent=19 // pred_region
            _
          $region35: #{custom-call.8} parent=19 // pred_fallthru
            _
        $region20: #{custom-call.8} parent=15 // pred_fallthru
          _
        %108 = vnop
      $region16: #{custom-call.8} parent=5 // pred_fallthru
        _
      %p109 = scmp.le.s32.totalorder 1, %s9
      %p110 = scmp.lt.s32.totalorder %s9, 5
      %p111 = pnand %p109, %p110
      %p112 = pneg %p111
      // Predicated region
      $region36: #{custom-call.8} parent=5 // pred_check
        _
      $region37: #{custom-call.8} parent=5 // pred_check_branch
        %114 = sbr.rel (%p111) target = $region39
      $region38: #{custom-call.8} parent=5 // pred_region
        #allocation7 [shape = 's32[16,128]{1,0}', space=vmem, size = 0x2000, scoped, tag = 'scratch for permutations']
        %s115 = ssub.s32 %s9, 1
        %s116 = sand.u32 %s14, 1
        %s117 = sand.u32 %s14, 1
        %s118 = smul.addr %s117, 16
        %s119 = scalar_lea.vmem [#allocation0], %s118
        %s120 = sand.u32 %s14, 1
        %s121 = sand.u32 %s14, 1
        %s122 = smul.addr %s121, 16
        %s123 = scalar_lea.vmem [#allocation0], %s122
        %s124 = sand.u32 %s14, 1
        %s125 = sand.u32 %s14, 1
        %s126 = smul.addr %s125, 16
        %s127 = scalar_lea.vmem [#allocation1], %s126
        %p128 = pneg %p37
        %p129 = pneg %p34
        %s130 = sand.u32 %s24, 1
        %s131 = scalar_lea.sflag [#allocation4], %s130
        %s132 = sand.u32 %s24, 1
        %s133 = smul.addr %s132, 4
        %s134 = scalar_lea.vmem [#allocation3], %s133
        %p135 = pneg %p65
        %p136 = pneg %p62
        %s137 = sand.u32 %s52, 1
        %s138 = sand.u32 %s52, 1
        %s139 = smul.addr %s138, 4
        %s140 = scalar_lea.vmem [#allocation6], %s139
        %s141 = sshrl.u32 %s14, 3
        %s142 = sshrl.u32 %s14, 3
        %v143 = vld [vmem:[%s119] sm:$0xff]
        %144 = vst [vmem:[%s127] sm:$0xff] %v143
        %s145 = scalar_lea.vmem %s127, 8 [#allocation1]
        %s146 = scalar_lea.vmem %s119, 8 [#allocation0]
        %v147 = vld [vmem:[%s146] sm:$0xff]
        %148 = vst [vmem:[%s145] sm:$0xff] %v147
        %s149 = sand.u32 %s14, 7
        %s150 = scalar_lea.vmem [#allocation2], %s149
        %s151 = sand.u32 %s14, 7
        %s152 = scalar_lea.vmem [#allocation5], %s151
        %153 = vst [vmem:[%s150] sm:$0x1] 0
        %v154 = vlaneseq
        %v155 = vshrl.u32 %v154, 7
        %v156 = vmov %v155
        loop: start=0, step=1, limit=2
        $region40: #{custom-call.8} parent=38 // loop_pre_header
          _
        $region41: #{custom-call.8} parent=38 // loop_header
          %s158 = sphi 0, %s162
          %p159 = scmp.ge.s32.totalorder %s158, 2
        $region42: #{custom-call.8} parent=38 // loop_header_branch
          %161 = sbr.rel (%p159) target = $region46
        $region43: #{custom-call.8} parent=38 // loop_body
          %s163 = smul.addr %s158, 8
          %s164 = scalar_lea.vmem [#allocation7], %s163
          %s165 = smul.u32 %s158, 8
          %v166 = vstv %s165
          %v167 = vadd.s32 %v156, %v166
          %168 = vst [vmem:[%s164] sm:$0xff] %v167
        $region44: #{custom-call.8} parent=38 // loop_footer
          %s162 = sadd.s32 1, %s158
        $region45: #{custom-call.8} parent=38 // loop_footer_branch
          %157 = sbr.rel target = $region41
        $region46: #{custom-call.8} parent=38 // loop_exit
          _
        loop: start=0, step=1, limit=16
        $region47: #{custom-call.8} parent=38 // loop_pre_header
          _
        $region48: #{custom-call.8} parent=38 // loop_header
          %s170 = sphi 0, %s174
          %p171 = scmp.ge.s32.totalorder %s170, 16
        $region49: #{custom-call.8} parent=38 // loop_header_branch
          %173 = sbr.rel (%p171) target = $region53
        $region50: #{custom-call.8} parent=38 // loop_body
          %v175 = vstv %s170
          %v176 = vlaneseq
          %v177 = vshrl.u32 %v176, 7
          %v178 = vmov %v177
          %v179 = vld [vmem:[%s127] sm:$0xff]
          %v180 = vand.u32 2147483647, %v179
          %v182 = vstv %s170
          %vm183 = vcmp.ge.s32.totalorder %v178, %v182
          %vm184 = vcmp.lt.s32.totalorder %v178, 16
          %vm185 = vmand %vm183, %vm184
          %vm186 = vcmp.lt.f32.partialorder -inf, %v180
          %vm187 = vmand %vm185, %vm186
          %v188 = vsel %vm187, %v178, %v175
          %v189 = vsel %vm187, %v180, -inf
          %s190 = scalar_lea.vmem %s127, 8 [#allocation1]
          %v191 = vld [vmem:[%s190] sm:$0xff]
          %v192 = vand.u32 2147483647, %v191
          %v193 = vadd.s32 %v178, 8
          %v194 = vstv %s170
          %vm195 = vcmp.ge.s32.totalorder %v193, %v194
          %vm196 = vcmp.lt.s32.totalorder %v193, 16
          %vm197 = vmand %vm195, %vm196
          %vm198 = vcmp.lt.f32.partialorder %v189, %v192
          %vm199 = vmand %vm197, %vm198
          %v200 = vsel %vm199, %v193, %v188
          %v201 = vsel %vm199, %v192, %v189
          %v202 = vrot.slane %v201, 1
          %v203 = vrot.slane %v200, 1
          %vm204 = vcmp.ge.f32.partialorder %v202, %v201
          %v205 = vsel %vm204, %v202, %v201
          %v206 = vsel %vm204, %v203, %v200
          %v207 = vrot.slane %v202, 1
          %v208 = vrot.slane %v203, 1
          %vm209 = vcmp.ge.f32.partialorder %v207, %v205
          %v210 = vsel %vm209, %v207, %v205
          %v211 = vsel %vm209, %v208, %v206
          %v212 = vrot.slane %v207, 1
          %v213 = vrot.slane %v208, 1
          %vm214 = vcmp.ge.f32.partialorder %v212, %v210
          %v215 = vsel %vm214, %v212, %v210
          %v216 = vsel %vm214, %v213, %v211
          %v217 = vrot.slane %v212, 1
          %v218 = vrot.slane %v213, 1
          %vm219 = vcmp.ge.f32.partialorder %v217, %v215
          %v220 = vsel %vm219, %v217, %v215
          %v221 = vsel %vm219, %v218, %v216
          %v222 = vrot.slane %v217, 1
          %v223 = vrot.slane %v218, 1
          %vm224 = vcmp.ge.f32.partialorder %v222, %v220
          %v225 = vsel %vm224, %v222, %v220
          %v226 = vsel %vm224, %v223, %v221
          %v227 = vrot.slane %v222, 1
          %v228 = vrot.slane %v223, 1
          %vm229 = vcmp.ge.f32.partialorder %v227, %v225
          %v230 = vsel %vm229, %v227, %v225
          %v231 = vsel %vm229, %v228, %v226
          %v232 = vrot.slane %v227, 1
          %v233 = vrot.slane %v228, 1
          %vm234 = vcmp.ge.f32.partialorder %v232, %v230
          %v235 = vsel %vm234, %v232, %v230
          %v236 = vsel %vm234, %v233, %v231
          %s237 = ssub.s32 128, %s170
          %238 = vrot.lane.b32.xlu0 %v236, %s237
          %v239 = vpop.permute.xlu0 %238
          %s240 = vtos %v239
          %v241 = vstv %s170
          %v242 = vlaneseq
          %v243 = vand.u32 %v242, 127
          %vm244 = vcmp.eq.s32.totalorder %v243, %v241
          %v245 = vstv %s240
          %v246 = vld [vmem:[%s150] ss:$0 sm:$0xff]
          %v247 = vsel %vm244, %v245, %v246
          %248 = vst [vmem:[%s150] sm:$0x1] %v247
          %s249 = scalar_lea.vmem %s127, %s170 [#allocation1]
          %s250 = scalar_lea.vmem %s127, %s240 [#allocation1]
          %v251 = vld [vmem:[%s249] ss:$0 sm:$0xff]
          %v252 = vld [vmem:[%s250] ss:$0 sm:$0xff]
          %253 = vst [vmem:[%s250] sm:$0x1] %v251
          %254 = vst [vmem:[%s249] sm:$0x1] %v252
          %s255 = scalar_lea.vmem [#allocation7], %s170
          %s256 = scalar_lea.vmem [#allocation7], %s240
          %v257 = vld [vmem:[%s255] ss:$0 sm:$0xff]
          %v258 = vld [vmem:[%s256] ss:$0 sm:$0xff]
          %259 = vst [vmem:[%s256] sm:$0x1] %v257
          %260 = vst [vmem:[%s255] sm:$0x1] %v258
          %vm261 = vcmp.ne.f32.partialorder %v252, 0.0
          %vm262 = vmand %vm244, %vm261
          %v263 = vsel %vm262, %v252, 1.0
          %v264 = vlaneseq
          %v265 = vand.u32 %v264, 127
          %v266 = vstv %s170
          %vm267 = vcmp.gt.s32.totalorder %v265, %v266
          %v268 = vsel %vm267, %v252, 0.0
          %v269 = vlaneseq
          %v270 = vshrl.u32 %v269, 7
          %v271 = vmov %v270
          %v272 = vld [vmem:[%s127] sm:$0xff]
          %v274 = vstv %s170
          %vm275 = vcmp.gt.s32.totalorder %v271, %v274
          %v276 = vsel %vm275, %v263, 1.0
          %v277 = vrcp.pop %v276
          %v278 = vmul.f32 %v272, %v277
          %vm279 = vmand %vm275, %vm244
          %v280 = vsel %vm279, %v278, 0.0
          %281 = vadd.xlane.f32.xlu0 %v280
          %v282 = vpop.xlane.xlu0 %281
          %v283 = vmul.f32 %v282, %v268
          %v284 = vsub.f32 %v278, %v283
          %285 = vst [vmem:[%s127] sm:$0xff] %v284
          %s286 = scalar_lea.vmem %s127, 8 [#allocation1]
          %v287 = vld [vmem:[%s286] sm:$0xff]
          %v288 = vadd.s32 %v271, 8
          %v289 = vstv %s170
          %vm290 = vcmp.gt.s32.totalorder %v288, %v289
          %v291 = vsel %vm290, %v263, 1.0
          %v292 = vrcp.pop %v291
          %v293 = vmul.f32 %v287, %v292
          %vm294 = vmand %vm290, %vm244
          %v295 = vsel %vm294, %v293, 0.0
          %296 = vadd.xlane.f32.xlu0 %v295
          %v297 = vpop.xlane.xlu0 %296
          %v298 = vmul.f32 %v297, %v268
          %v299 = vsub.f32 %v293, %v298
          %300 = vst [vmem:[%s286] sm:$0xff] %v299
        $region51: #{custom-call.8} parent=38 // loop_footer
          %s174 = sadd.s32 1, %s170
        $region52: #{custom-call.8} parent=38 // loop_footer_branch
          %169 = sbr.rel target = $region48
        $region53: #{custom-call.8} parent=38 // loop_exit
          _
        %v301 = vld [vmem:[#allocation7] sm:$0xff]
        %s302 = scalar_lea.vmem [#allocation7], 8
        %v303 = vld [vmem:[%s302] sm:$0xff]
        %s304 = scalar_lea.vmem [#allocation7], 16
        %s305 = scalar_lea.vmem [#allocation7], 24
        %s306 = scalar_lea.vmem [#allocation7], 32
        %s307 = scalar_lea.vmem [#allocation7], 40
        %s308 = scalar_lea.vmem [#allocation7], 48
        %s309 = scalar_lea.vmem [#allocation7], 56
        %s310 = scalar_lea.vmem [#allocation7], 64
        %s311 = scalar_lea.vmem [#allocation7], 72
        %s312 = scalar_lea.vmem [#allocation7], 80
        %s313 = scalar_lea.vmem [#allocation7], 88
        %s314 = scalar_lea.vmem [#allocation7], 96
        %s315 = scalar_lea.vmem [#allocation7], 104
        %s316 = scalar_lea.vmem [#allocation7], 112
        %s317 = scalar_lea.vmem [#allocation7], 120
        %318 = vxpose.xlu0.b32.start [1/16] %v301, 128
        %319 = vxpose.xlu0.b32.cont [2/16] %v303, 128
        %320 = vxpose.xlu0.b32.cont [3/16] 0, 128
        %321 = vxpose.xlu0.b32.cont [4/16] 0, 128
        %322 = vxpose.xlu0.b32.cont [5/16] 0, 128
        %323 = vxpose.xlu0.b32.cont [6/16] 0, 128
        %324 = vxpose.xlu0.b32.cont [7/16] 0, 128
        %325 = vxpose.xlu0.b32.cont [8/16] 0, 128
        %326 = vxpose.xlu0.b32.cont [9/16] 0, 128
        %327 = vxpose.xlu0.b32.cont [10/16] 0, 128
        %328 = vxpose.xlu0.b32.cont [11/16] 0, 128
        %329 = vxpose.xlu0.b32.cont [12/16] 0, 128
        %330 = vxpose.xlu0.b32.cont [13/16] 0, 128
        %331 = vxpose.xlu0.b32.cont [14/16] 0, 128
        %332 = vxpose.xlu0.b32.cont [15/16] 0, 128
        %333 = vxpose.xlu0.b32.end [16/16] 0, 128
        %v334 = vpop.trf.xlu0
        %v335 = vpop.trf.xlu0
        %v336 = vpop.trf.xlu0
        %v337 = vpop.trf.xlu0
        %v338 = vpop.trf.xlu0
        %v339 = vpop.trf.xlu0
        %v340 = vpop.trf.xlu0
        %v341 = vpop.trf.xlu0
        %v342 = vpop.trf.xlu0
        %v343 = vpop.trf.xlu0
        %v344 = vpop.trf.xlu0
        %v345 = vpop.trf.xlu0
        %v346 = vpop.trf.xlu0
        %v347 = vpop.trf.xlu0
        %v348 = vpop.trf.xlu0
        %v349 = vpop.trf.xlu0
        %350 = vst [vmem:[%s152] sm:$0x1] %v334
        %s352 = sshll.u32 1, 4
        %s353 = ssub.s32 %s352, 1
        %v355 = vld [vmem:[#allocation2] sm:%s353]
        %s356 = sshll.u32 1, 4
        %s357 = ssub.s32 %s356, 1
        %358 = vst [vmem:[%s134] sm:%s357] %v355
        %s360 = sshll.u32 1, 4
        %s361 = ssub.s32 %s360, 1
        %v363 = vld [vmem:[#allocation5] sm:%s361]
        %s364 = sshll.u32 1, 4
        %s365 = ssub.s32 %s364, 1
        %366 = vst [vmem:[%s140] sm:%s365] %v363
        %s367 = sand.u32 %s14, 1
        %s368 = sand.u32 %s14, 1
        %s369 = smul.addr %s368, 16
        %s370 = scalar_lea.vmem [#allocation1], %s369
        %s371 = sand.u32 %s24, 1
        %s372 = scalar_lea.sflag [#allocation4], %s371
        %s373 = sand.u32 %s24, 1
        %s374 = smul.addr %s373, 4
        %s375 = scalar_lea.vmem [#allocation3], %s374
        %s376 = sand.u32 %s52, 1
        %s377 = sand.u32 %s52, 1
        %s378 = smul.addr %s377, 4
        %s379 = scalar_lea.vmem [#allocation6], %s378
        %s380 = smul.addr %s14, 16
        %s381 = scalar_lea.vmem %s1, %s380
        // Predicated region
        $region54: #{custom-call.8} parent=38 // pred_check
          _
        $region55: #{custom-call.8} parent=38 // pred_check_branch
          %383 = sbr.rel (0) target = $region57
        $region56: #{custom-call.8} parent=38 // pred_region
          // Predicated region
          $region58: #{custom-call.8} parent=56 // pred_check
            _
          $region59: #{custom-call.8} parent=56 // pred_check_branch
            %385 = sbr.rel (0) target = $region61
          $region60: #{custom-call.8} parent=56 // pred_region
            loop: start=0, step=1, limit=1
            $region62: #{custom-call.8} parent=60 // loop_pre_header
              _
            $region63: #{custom-call.8} parent=60 // loop_header
              %s387 = sphi 0, %s391
              %p388 = scmp.ge.s32.totalorder %s387, 1
              %s392 = sphi %s370, %s370
              %s393 = sphi %s381, %s381
            $region64: #{custom-call.8} parent=60 // loop_header_branch
              %390 = sbr.rel (%p388) target = $region68
            $region65: #{custom-call.8} parent=60 // loop_body
              %v394 = vld [vmem:[%s392] sm:$0xff]
              %395 = vst [vmem:[%s393] sm:$0xff] %v394
              %v396 = vld [vmem:[%s392 + $0x8] sm:$0xff]
              %397 = vst [vmem:[%s393 + $0x8] sm:$0xff] %v396
            $region66: #{custom-call.8} parent=60 // loop_footer
              %s391 = sadd.s32 1, %s387
            $region67: #{custom-call.8} parent=60 // loop_footer_branch
              %386 = sbr.rel target = $region63
            $region68: #{custom-call.8} parent=60 // loop_exit
              _
          $region61: #{custom-call.8} parent=56 // pred_fallthru
            _
          // Predicated region
          $region69: #{custom-call.8} parent=56 // pred_check
            _
          $region70: #{custom-call.8} parent=56 // pred_check_branch
            %399 = sbr.rel target = $region72
          $region71: #{custom-call.8} parent=56 // pred_region
            _
          $region72: #{custom-call.8} parent=56 // pred_fallthru
            _
        $region57: #{custom-call.8} parent=38 // pred_fallthru
          _
        %400 = vnop
        // Predicated region
        $region73: #{custom-call.8} parent=38 // pred_check
          %p401 = pneg %p34
        $region74: #{custom-call.8} parent=38 // pred_check_branch
          %403 = sbr.rel (%p401) target = $region76
        $region75: #{custom-call.8} parent=38 // pred_region
          %s404 = sshrl.u32 %s14, 3
          %s406 = ssub.s32 64, 64
          %407 = vsyncadd %s372, %s406
          %s408 = smul.addr %s404, 64
          %s409 = scalar_lea.hbm %s2, %s408
          %s411 = sshll.u32 %s375, 4
          %s412 = int_to_ptr.vmem [resolvable:$true] %s411
          %414 = dma.vmem_to_hbm [thread:$0]  %s412, 64, %s409, %s372
        $region76: #{custom-call.8} parent=38 // pred_fallthru
          _
        // Predicated region
        $region77: #{custom-call.8} parent=38 // pred_check
          %p415 = pneg %p62
        $region78: #{custom-call.8} parent=38 // pred_check_branch
          %417 = sbr.rel (%p415) target = $region80
        $region79: #{custom-call.8} parent=38 // pred_region
          %s418 = sshrl.u32 %s14, 3
          %s419 = smul.addr %s418, 4
          %s420 = scalar_lea.vmem %s3, %s419
          // Predicated region
          $region81: #{custom-call.8} parent=79 // pred_check
            _
          $region82: #{custom-call.8} parent=79 // pred_check_branch
            %422 = sbr.rel (0) target = $region84
          $region83: #{custom-call.8} parent=79 // pred_region
            // Predicated region
            $region85: #{custom-call.8} parent=83 // pred_check
              _
            $region86: #{custom-call.8} parent=83 // pred_check_branch
              %424 = sbr.rel target = $region88
            $region87: #{custom-call.8} parent=83 // pred_region
              // Predicated region
              $region100: #{custom-call.8} parent=87 // pred_check
                _
              $region101: #{custom-call.8} parent=87 // pred_check_branch
                %440 = sbr.rel (0) target = $region103
              $region102: #{custom-call.8} parent=87 // pred_region
                %s442 = ssub.s32 16, 1
                loop: start=0, step=1, limit=1
                $region104: #{custom-call.8} parent=102 // loop_pre_header
                  _
                $region105: #{custom-call.8} parent=102 // loop_header
                  %s444 = sphi 0, %s448
                  %p445 = scmp.ge.s32.totalorder %s444, 1
                  %s449 = sphi %s379, %s379
                  %s450 = sphi %s420, %s420
                $region106: #{custom-call.8} parent=102 // loop_header_branch
                  %447 = sbr.rel (%p445) target = $region110
                $region107: #{custom-call.8} parent=102 // loop_body
                  %v451 = vld [vmem:[%s449] sm:%s442]
                  %452 = vst [vmem:[%s450] sm:%s442] %v451
                $region108: #{custom-call.8} parent=102 // loop_footer
                  %s448 = sadd.s32 1, %s444
                $region109: #{custom-call.8} parent=102 // loop_footer_branch
                  %443 = sbr.rel target = $region105
                $region110: #{custom-call.8} parent=102 // loop_exit
                  _
              $region103: #{custom-call.8} parent=87 // pred_fallthru
                _
            $region88: #{custom-call.8} parent=83 // pred_fallthru
              _
            // Predicated region
            $region89: #{custom-call.8} parent=83 // pred_check
              _
            $region90: #{custom-call.8} parent=83 // pred_check_branch
              %426 = sbr.rel (0) target = $region92
            $region91: #{custom-call.8} parent=83 // pred_region
              %s428 = ssub.s32 16, 1
              loop: start=0, step=1, limit=1
              $region93: #{custom-call.8} parent=91 // loop_pre_header
                _
              $region94: #{custom-call.8} parent=91 // loop_header
                %s430 = sphi 0, %s434
                %p431 = scmp.ge.s32.totalorder %s430, 1
                %s435 = sphi %s379, %s379
                %s436 = sphi %s420, %s420
              $region95: #{custom-call.8} parent=91 // loop_header_branch
                %433 = sbr.rel (%p431) target = $region99
              $region96: #{custom-call.8} parent=91 // loop_body
                %v437 = vld [vmem:[%s435] sm:%s428]
                %438 = vst [vmem:[%s436] sm:%s428] %v437
              $region97: #{custom-call.8} parent=91 // loop_footer
                %s434 = sadd.s32 1, %s430
              $region98: #{custom-call.8} parent=91 // loop_footer_branch
                %429 = sbr.rel target = $region94
              $region99: #{custom-call.8} parent=91 // loop_exit
                _
            $region92: #{custom-call.8} parent=83 // pred_fallthru
              _
          $region84: #{custom-call.8} parent=79 // pred_fallthru
            _
          %453 = vnop
        $region80: #{custom-call.8} parent=38 // pred_fallthru
          _
      $region39: #{custom-call.8} parent=5 // pred_fallthru
        _
      %p454 = scmp.le.s32.totalorder 2, %s9
      // Predicated region
      $region111: #{custom-call.8} parent=5 // pred_check
        %p455 = pneg %p454
      $region112: #{custom-call.8} parent=5 // pred_check_branch
        %457 = sbr.rel (%p455) target = $region114
      $region113: #{custom-call.8} parent=5 // pred_region
        %s458 = ssub.s32 %s9, 2
        %s459 = sand.u32 %s15, 1
        %s460 = sand.u32 %s15, 1
        %s461 = smul.addr %s460, 16
        %s462 = scalar_lea.vmem [#allocation1], %s461
        // Predicated region
        $region115: #{custom-call.8} parent=113 // pred_check
          %p463 = pneg %p40
        $region116: #{custom-call.8} parent=113 // pred_check_branch
          %465 = sbr.rel (%p463) target = $region118
        $region117: #{custom-call.8} parent=113 // pred_region
          %s466 = sand.u32 %s25, 1
          %s467 = scalar_lea.sflag [#allocation4], %s466
          %s468 = sand.u32 %s25, 1
          %s469 = smul.addr %s468, 4
          %s470 = scalar_lea.vmem [#allocation3], %s469
          %471 = dma.done %s467, 64
        $region118: #{custom-call.8} parent=113 // pred_fallthru
          _
        // Predicated region
        $region119: #{custom-call.8} parent=113 // pred_check
          %p472 = pneg %p68
        $region120: #{custom-call.8} parent=113 // pred_check_branch
          %474 = sbr.rel (%p472) target = $region122
        $region121: #{custom-call.8} parent=113 // pred_region
          %s475 = sand.u32 %s53, 1
          %s476 = sand.u32 %s53, 1
          %s477 = smul.addr %s476, 4
          %s478 = scalar_lea.vmem [#allocation6], %s477
        $region122: #{custom-call.8} parent=113 // pred_fallthru
          _
      $region114: #{custom-call.8} parent=5 // pred_fallthru
        _
    $region6: #{custom-call.8} parent=1 // loop_footer
      %s13 = sadd.s32 1, %s9
    $region7: #{custom-call.8} parent=1 // loop_footer_branch
      %8 = sbr.rel target = $region3
    $region8: #{custom-call.8} parent=1 // loop_exit
      _
    %479 = vsyncpa [#allocation4], 1
    %s480 = scalar_lea.sflag [#allocation4], 1
    %481 = vsyncpa %s480, 1

// kernel: custom-call.10
$region0: #{custom-call.10}
  %s0 = inlined_call_operand.vmem [shape: f32[4,1,16,16], index: 0, kind: input, shape index: {}]
  %s1 = inlined_call_operand.vmem [shape: f32[4,1,16,16], index: 1, kind: output, shape index: {}]
  $region1: #{custom-call.10} parent=0
    #allocation0 [shape = 'u8[16384]{0}', space=vmem, size = 0x4000, scoped, tag = 'operand span for operand 0']
    #allocation1 [shape = 'u8[16384]{0}', space=vmem, size = 0x4000, scoped, tag = 'operand span for operand 1']
    loop: start=0, step=1, limit=6
    $region2: #{custom-call.10} parent=1 // loop_pre_header
      _
    $region3: #{custom-call.10} parent=1 // loop_header
      %s3 = sphi 0, %s7
      %p4 = scmp.ge.s32.totalorder %s3, 6
      %s10 = sphi 0, %s36
      %s11 = sphi 0, %s32
      %s12 = sphi 0, %s28
      %s13 = sphi 0, %s24
      %s14 = sphi 0, %s10
      %s15 = sphi 0, %s11
      %s16 = sphi 0, %s12
      %s17 = sphi 0, %s13
      %s18 = sphi 0, %s14
      %s19 = sphi 0, %s15
      %s20 = sphi 0, %s16
      %s21 = sphi 0, %s17
    $region4: #{custom-call.10} parent=1 // loop_header_branch
      %6 = sbr.rel (%p4) target = $region8
    $region5: #{custom-call.10} parent=1 // loop_body
      %s8 = ssub.s32 %s3, 1
      %s9 = ssub.s32 %s3, 2
      %s22 = sadd.s32 1, %s13
      %p23 = scmp.ge.s32.totalorder %s22, 1
      %s24 = scalar_select %p23, 0, %s22
      %s25 = sadd.s32 1, %s12
      %s26 = scalar_select %p23, %s25, %s12
      %p27 = scmp.ge.s32.totalorder %s26, 1
      %s28 = scalar_select %p27, 0, %s26
      %s29 = sadd.s32 1, %s11
      %s30 = scalar_select %p27, %s29, %s11
      %p31 = scmp.ge.s32.totalorder %s30, 1
      %s32 = scalar_select %p31, 0, %s30
      %s33 = sadd.s32 1, %s10
      %s34 = scalar_select %p31, %s33, %s10
      %p35 = scmp.ge.s32.totalorder %s34, 4
      %s36 = scalar_select %p35, 0, %s34
      %p37 = scmp.le.s32.totalorder 1, %s3
      %p38 = scmp.lt.s32.totalorder %s3, 5
      %p39 = pnand %p37, %p38
      %p40 = pneg %p39
      // Predicated region
      $region9: #{custom-call.10} parent=5 // pred_check
        _
      $region10: #{custom-call.10} parent=5 // pred_check_branch
        %42 = sbr.rel (%p39) target = $region12
      $region11: #{custom-call.10} parent=5 // pred_region
        %s43 = ssub.s32 %s3, 1
      $region12: #{custom-call.10} parent=5 // pred_fallthru
        _
      %p44 = scmp.lt.s32.totalorder %s3, 4
      // Predicated region
      $region13: #{custom-call.10} parent=5 // pred_check
        %p45 = pneg %p44
      $region14: #{custom-call.10} parent=5 // pred_check_branch
        %47 = sbr.rel (%p45) target = $region16
      $region15: #{custom-call.10} parent=5 // pred_region
        %s48 = sand.u32 %s3, 1
        %s49 = sand.u32 %s3, 1
        %s50 = smul.addr %s49, 16
        %s51 = scalar_lea.vmem [#allocation0], %s50
        %s52 = sadd.s32 %s13, %s12
        %s53 = smul.addr %s11, 2
        %s54 = sadd.s32 %s52, %s53
        %s55 = smul.addr %s10, 2
        %s56 = sadd.s32 %s54, %s55
        %s57 = smul.addr %s56, 8
        %s58 = scalar_lea.vmem %s0, %s57
        // Predicated region
        $region17: #{custom-call.10} parent=15 // pred_check
          _
        $region18: #{custom-call.10} parent=15 // pred_check_branch
          %60 = sbr.rel (0) target = $region20
        $region19: #{custom-call.10} parent=15 // pred_region
          // Predicated region
          $region21: #{custom-call.10} parent=19 // pred_check
            _
          $region22: #{custom-call.10} parent=19 // pred_check_branch
            %62 = sbr.rel (0) target = $region24
          $region23: #{custom-call.10} parent=19 // pred_region
            // Predicated region
            $region36: #{custom-call.10} parent=23 // pred_check
              _
            $region37: #{custom-call.10} parent=23 // pred_check_branch
              %80 = sbr.rel (0) target = $region39
            $region38: #{custom-call.10} parent=23 // pred_region
              loop: start=0, step=1, limit=1
              $region40: #{custom-call.10} parent=38 // loop_pre_header
                _
              $region41: #{custom-call.10} parent=38 // loop_header
                %s82 = sphi 0, %s86
                %p83 = scmp.ge.s32.totalorder %s82, 1
                %s87 = sphi %s58, %s58
                %s88 = sphi %s51, %s51
              $region42: #{custom-call.10} parent=38 // loop_header_branch
                %85 = sbr.rel (%p83) target = $region46
              $region43: #{custom-call.10} parent=38 // loop_body
                %v89 = vld [vmem:[%s87] sm:$0xff]
                %90 = vst [vmem:[%s88] sm:$0xff] %v89
                %v91 = vld [vmem:[%s87 + $0x8] sm:$0xff]
                %92 = vst [vmem:[%s88 + $0x8] sm:$0xff] %v91
              $region44: #{custom-call.10} parent=38 // loop_footer
                %s86 = sadd.s32 1, %s82
              $region45: #{custom-call.10} parent=38 // loop_footer_branch
                %81 = sbr.rel target = $region41
              $region46: #{custom-call.10} parent=38 // loop_exit
                _
            $region39: #{custom-call.10} parent=23 // pred_fallthru
              _
            // Predicated region
            $region47: #{custom-call.10} parent=23 // pred_check
              _
            $region48: #{custom-call.10} parent=23 // pred_check_branch
              %94 = sbr.rel target = $region50
            $region49: #{custom-call.10} parent=23 // pred_region
              _
            $region50: #{custom-call.10} parent=23 // pred_fallthru
              _
          $region24: #{custom-call.10} parent=19 // pred_fallthru
            _
          // Predicated region
          $region25: #{custom-call.10} parent=19 // pred_check
            _
          $region26: #{custom-call.10} parent=19 // pred_check_branch
            %64 = sbr.rel target = $region28
          $region27: #{custom-call.10} parent=19 // pred_region
            %s66 = ssub.s32 256, 1
            loop: start=0, step=1, limit=1
            $region29: #{custom-call.10} parent=27 // loop_pre_header
              _
            $region30: #{custom-call.10} parent=27 // loop_header
              %s68 = sphi 0, %s72
              %p69 = scmp.ge.s32.totalorder %s68, 1
              %s73 = sphi %s58, %s58
              %s74 = sphi %s51, %s51
            $region31: #{custom-call.10} parent=27 // loop_header_branch
              %71 = sbr.rel (%p69) target = $region35
            $region32: #{custom-call.10} parent=27 // loop_body
              %v75 = vld [vmem:[%s73] sm:%s66]
              %76 = vst [vmem:[%s74] sm:%s66] %v75
              %v77 = vld [vmem:[%s73 + $0x8] sm:%s66]
              %78 = vst [vmem:[%s74 + $0x8] sm:%s66] %v77
            $region33: #{custom-call.10} parent=27 // loop_footer
              %s72 = sadd.s32 1, %s68
            $region34: #{custom-call.10} parent=27 // loop_footer_branch
              %67 = sbr.rel target = $region30
            $region35: #{custom-call.10} parent=27 // loop_exit
              _
          $region28: #{custom-call.10} parent=19 // pred_fallthru
            _
        $region20: #{custom-call.10} parent=15 // pred_fallthru
          _
        %95 = vnop
      $region16: #{custom-call.10} parent=5 // pred_fallthru
        _
      %p96 = scmp.le.s32.totalorder 1, %s3
      %p97 = scmp.lt.s32.totalorder %s3, 5
      %p98 = pnand %p96, %p97
      %p99 = pneg %p98
      // Predicated region
      $region51: #{custom-call.10} parent=5 // pred_check
        _
      $region52: #{custom-call.10} parent=5 // pred_check_branch
        %101 = sbr.rel (%p98) target = $region54
      $region53: #{custom-call.10} parent=5 // pred_region
        #allocation2 [shape = 'f32[16,16]{1,0}', space=vmem, size = 0x2000, scoped, tag = 'rescaled input a']
        %s102 = ssub.s32 %s3, 1
        %s103 = sand.u32 %s8, 1
        %s104 = sand.u32 %s8, 1
        %s105 = smul.addr %s104, 16
        %s106 = scalar_lea.vmem [#allocation0], %s105
        %s107 = sand.u32 %s8, 1
        %s108 = sand.u32 %s8, 1
        %s109 = smul.addr %s108, 16
        %s110 = scalar_lea.vmem [#allocation0], %s109
        %s111 = sand.u32 %s8, 1
        %s112 = sand.u32 %s8, 1
        %s113 = smul.addr %s112, 16
        %s114 = scalar_lea.vmem [#allocation1], %s113
        %v115 = vlaneseq
        %v116 = vand.u32 %v115, 127
        %vm117 = vcmp.lt.s32.totalorder %v116, 16
        %v118 = vlaneseq
        %v119 = vshrl.u32 %v118, 7
        %vm121 = vcmp.eq.s32.totalorder %v119, %v116
        %v122 = vld [vmem:[%s106] sm:$0xff]
        %v123 = vsel %vm121, %v122, 0.0
        %124 = vadd.xlane.f32.xlu0 %v123
        %v125 = vpop.xlane.xlu0 %124
        %vm126 = vcmp.ge.s32.totalorder %v119, %v116
        %vm127 = vmand %vm126, %vm117
        %v128 = vsel %vm127, %v122, 0.0
        %v129 = vrcp.pop %v125
        %v130 = vmul.f32 %v128, %v129
        %131 = vst [vmem:[#allocation2] sm:$0xff] %v130
        %s132 = scalar_lea.vmem %s106, 8 [#allocation0]
        %s133 = scalar_lea.vmem [#allocation2], 8
        %v134 = vlaneseq
        %v135 = vshrl.u32 %v134, 7
        %v136 = vadd.s32 %v135, 8
        %vm137 = vcmp.eq.s32.totalorder %v136, %v116
        %v138 = vld [vmem:[%s132] sm:$0xff]
        %v139 = vsel %vm137, %v138, 0.0
        %140 = vadd.xlane.f32.xlu0 %v139
        %v141 = vpop.xlane.xlu0 %140
        %vm142 = vcmp.ge.s32.totalorder %v136, %v116
        %vm143 = vmand %vm142, %vm117
        %v144 = vsel %vm143, %v138, 0.0
        %v145 = vrcp.pop %v141
        %v146 = vmul.f32 %v144, %v145
        %147 = vst [vmem:[%s133] sm:$0xff] %v146
        %v148 = vlaneseq
        %v149 = vand.u32 %v148, 127
        %v150 = vlaneseq
        %v151 = vshrl.u32 %v150, 7
        %vm153 = vcmp.eq.s32.totalorder %v149, %v151
        %v154 = vlaneseq
        %v155 = vand.u32 %v154, 127
        %vm156 = vcmp.eq.s32.totalorder %v155, 0
        %v157 = vsel %vm156, 1.0, -1.0
        %v158 = vsel %vm153, %v157, 0.0
        %v159 = vlaneseq
        %v160 = vand.u32 %v159, 127
        %v161 = vlaneseq
        %v162 = vshrl.u32 %v161, 7
        %v163 = vadd.s32 %v162, 8
        %vm164 = vcmp.eq.s32.totalorder %v160, %v163
        %v165 = vsel %vm164, -1.0, 0.0
        %s166 = scalar_lea.vmem [#allocation2], 1
        %v167 = vld [vmem:[%s166] ss:$0 sm:$0xff]
        %v168 = vxor.u32 %v167, 2147483648
        %v169 = vlaneseq
        %v170 = vand.u32 %v169, 127
        %vm171 = vcmp.eq.s32.totalorder %v170, 1
        %v172 = vmul.f32 %v168, %v158
        %173 = vadd.xlane.f32.xlu0 %v172
        %v174 = vpop.xlane.xlu0 %173
        %v175 = vsel %vm171, %v174, %v158
        %s176 = scalar_lea.vmem [#allocation2], 2
        %v177 = vld [vmem:[%s176] ss:$0 sm:$0xff]
        %v178 = vxor.u32 %v177, 2147483648
        %v179 = vlaneseq
        %v180 = vand.u32 %v179, 127
        %vm181 = vcmp.eq.s32.totalorder %v180, 2
        %v182 = vmul.f32 %v178, %v175
        %183 = vadd.xlane.f32.xlu0 %v182
        %v184 = vpop.xlane.xlu0 %183
        %v185 = vsel %vm181, %v184, %v175
        %s186 = scalar_lea.vmem [#allocation2], 3
        %v187 = vld [vmem:[%s186] ss:$0 sm:$0xff]
        %v188 = vxor.u32 %v187, 2147483648
        %v189 = vlaneseq
        %v190 = vand.u32 %v189, 127
        %vm191 = vcmp.eq.s32.totalorder %v190, 3
        %v192 = vmul.f32 %v188, %v185
        %193 = vadd.xlane.f32.xlu0 %v192
        %v194 = vpop.xlane.xlu0 %193
        %v195 = vsel %vm191, %v194, %v185
        %s196 = scalar_lea.vmem [#allocation2], 4
        %v197 = vld [vmem:[%s196] ss:$0 sm:$0xff]
        %v198 = vxor.u32 %v197, 2147483648
        %v199 = vlaneseq
        %v200 = vand.u32 %v199, 127
        %vm201 = vcmp.eq.s32.totalorder %v200, 4
        %v202 = vmul.f32 %v198, %v195
        %203 = vadd.xlane.f32.xlu0 %v202
        %v204 = vpop.xlane.xlu0 %203
        %v205 = vsel %vm201, %v204, %v195
        %s206 = scalar_lea.vmem [#allocation2], 5
        %v207 = vld [vmem:[%s206] ss:$0 sm:$0xff]
        %v208 = vxor.u32 %v207, 2147483648
        %v209 = vlaneseq
        %v210 = vand.u32 %v209, 127
        %vm211 = vcmp.eq.s32.totalorder %v210, 5
        %v212 = vmul.f32 %v208, %v205
        %213 = vadd.xlane.f32.xlu0 %v212
        %v214 = vpop.xlane.xlu0 %213
        %v215 = vsel %vm211, %v214, %v205
        %s216 = scalar_lea.vmem [#allocation2], 6
        %v217 = vld [vmem:[%s216] ss:$0 sm:$0xff]
        %v218 = vxor.u32 %v217, 2147483648
        %v219 = vlaneseq
        %v220 = vand.u32 %v219, 127
        %vm221 = vcmp.eq.s32.totalorder %v220, 6
        %v222 = vmul.f32 %v218, %v215
        %223 = vadd.xlane.f32.xlu0 %v222
        %v224 = vpop.xlane.xlu0 %223
        %v225 = vsel %vm221, %v224, %v215
        %s226 = scalar_lea.vmem [#allocation2], 7
        %v227 = vld [vmem:[%s226] ss:$0 sm:$0xff]
        %v228 = vxor.u32 %v227, 2147483648
        %v229 = vlaneseq
        %v230 = vand.u32 %v229, 127
        %vm231 = vcmp.eq.s32.totalorder %v230, 7
        %v232 = vmul.f32 %v228, %v225
        %233 = vadd.xlane.f32.xlu0 %v232
        %v234 = vpop.xlane.xlu0 %233
        %v235 = vsel %vm231, %v234, %v225
        %s236 = scalar_lea.vmem [#allocation2], 8
        %v237 = vld [vmem:[%s236] ss:$0 sm:$0xff]
        %v238 = vxor.u32 %v237, 2147483648
        %v239 = vlaneseq
        %v240 = vand.u32 %v239, 127
        %vm241 = vcmp.eq.s32.totalorder %v240, 8
        %v242 = vmul.f32 %v238, %v235
        %243 = vadd.xlane.f32.xlu0 %v242
        %v244 = vpop.xlane.xlu0 %243
        %v245 = vsel %vm241, %v244, %v235
        %v246 = vmul.f32 %v238, %v165
        %247 = vadd.xlane.f32.xlu0 %v246
        %v248 = vpop.xlane.xlu0 %247
        %v249 = vsel %vm241, %v248, %v165
        %s250 = scalar_lea.vmem [#allocation2], 9
        %v251 = vld [vmem:[%s250] ss:$0 sm:$0xff]
        %v252 = vxor.u32 %v251, 2147483648
        %v253 = vlaneseq
        %v254 = vand.u32 %v253, 127
        %vm255 = vcmp.eq.s32.totalorder %v254, 9
        %v256 = vmul.f32 %v252, %v245
        %257 = vadd.xlane.f32.xlu0 %v256
        %v258 = vpop.xlane.xlu0 %257
        %v259 = vsel %vm255, %v258, %v245
        %v260 = vmul.f32 %v252, %v249
        %261 = vadd.xlane.f32.xlu0 %v260
        %v262 = vpop.xlane.xlu0 %261
        %v263 = vsel %vm255, %v262, %v249
        %s264 = scalar_lea.vmem [#allocation2], 10
        %v265 = vld [vmem:[%s264] ss:$0 sm:$0xff]
        %v266 = vxor.u32 %v265, 2147483648
        %v267 = vlaneseq
        %v268 = vand.u32 %v267, 127
        %vm269 = vcmp.eq.s32.totalorder %v268, 10
        %v270 = vmul.f32 %v266, %v259
        %271 = vadd.xlane.f32.xlu0 %v270
        %v272 = vpop.xlane.xlu0 %271
        %v273 = vsel %vm269, %v272, %v259
        %v274 = vmul.f32 %v266, %v263
        %275 = vadd.xlane.f32.xlu0 %v274
        %v276 = vpop.xlane.xlu0 %275
        %v277 = vsel %vm269, %v276, %v263
        %s278 = scalar_lea.vmem [#allocation2], 11
        %v279 = vld [vmem:[%s278] ss:$0 sm:$0xff]
        %v280 = vxor.u32 %v279, 2147483648
        %v281 = vlaneseq
        %v282 = vand.u32 %v281, 127
        %vm283 = vcmp.eq.s32.totalorder %v282, 11
        %v284 = vmul.f32 %v280, %v273
        %285 = vadd.xlane.f32.xlu0 %v284
        %v286 = vpop.xlane.xlu0 %285
        %v287 = vsel %vm283, %v286, %v273
        %v288 = vmul.f32 %v280, %v277
        %289 = vadd.xlane.f32.xlu0 %v288
        %v290 = vpop.xlane.xlu0 %289
        %v291 = vsel %vm283, %v290, %v277
        %s292 = scalar_lea.vmem [#allocation2], 12
        %v293 = vld [vmem:[%s292] ss:$0 sm:$0xff]
        %v294 = vxor.u32 %v293, 2147483648
        %v295 = vlaneseq
        %v296 = vand.u32 %v295, 127
        %vm297 = vcmp.eq.s32.totalorder %v296, 12
        %v298 = vmul.f32 %v294, %v287
        %299 = vadd.xlane.f32.xlu0 %v298
        %v300 = vpop.xlane.xlu0 %299
        %v301 = vsel %vm297, %v300, %v287
        %v302 = vmul.f32 %v294, %v291
        %303 = vadd.xlane.f32.xlu0 %v302
        %v304 = vpop.xlane.xlu0 %303
        %v305 = vsel %vm297, %v304, %v291
        %s306 = scalar_lea.vmem [#allocation2], 13
        %v307 = vld [vmem:[%s306] ss:$0 sm:$0xff]
        %v308 = vxor.u32 %v307, 2147483648
        %v309 = vlaneseq
        %v310 = vand.u32 %v309, 127
        %vm311 = vcmp.eq.s32.totalorder %v310, 13
        %v312 = vmul.f32 %v308, %v301
        %313 = vadd.xlane.f32.xlu0 %v312
        %v314 = vpop.xlane.xlu0 %313
        %v315 = vsel %vm311, %v314, %v301
        %v316 = vmul.f32 %v308, %v305
        %317 = vadd.xlane.f32.xlu0 %v316
        %v318 = vpop.xlane.xlu0 %317
        %v319 = vsel %vm311, %v318, %v305
        %s320 = scalar_lea.vmem [#allocation2], 14
        %v321 = vld [vmem:[%s320] ss:$0 sm:$0xff]
        %v322 = vxor.u32 %v321, 2147483648
        %v323 = vlaneseq
        %v324 = vand.u32 %v323, 127
        %vm325 = vcmp.eq.s32.totalorder %v324, 14
        %v326 = vmul.f32 %v322, %v315
        %327 = vadd.xlane.f32.xlu0 %v326
        %v328 = vpop.xlane.xlu0 %327
        %v329 = vsel %vm325, %v328, %v315
        %v330 = vmul.f32 %v322, %v319
        %331 = vadd.xlane.f32.xlu0 %v330
        %v332 = vpop.xlane.xlu0 %331
        %v333 = vsel %vm325, %v332, %v319
        %s334 = scalar_lea.vmem [#allocation2], 15
        %v335 = vld [vmem:[%s334] ss:$0 sm:$0xff]
        %v336 = vxor.u32 %v335, 2147483648
        %v337 = vlaneseq
        %v338 = vand.u32 %v337, 127
        %vm339 = vcmp.eq.s32.totalorder %v338, 15
        %v340 = vmul.f32 %v336, %v329
        %341 = vadd.xlane.f32.xlu0 %v340
        %v342 = vpop.xlane.xlu0 %341
        %v343 = vsel %vm339, %v342, %v329
        %v344 = vmul.f32 %v336, %v333
        %345 = vadd.xlane.f32.xlu0 %v344
        %v346 = vpop.xlane.xlu0 %345
        %v347 = vsel %vm339, %v346, %v333
        %v348 = vrcp.pop %v125
        %v349 = vmul.f32 %v343, %v348
        %vm350 = vweird.f32 %v125
        %v351 = vsel %vm350, %v343, %v349
        %352 = vst [vmem:[%s114] sm:$0xff] %v351
        %v353 = vrcp.pop %v141
        %v354 = vmul.f32 %v347, %v353
        %vm355 = vweird.f32 %v141
        %v356 = vsel %vm355, %v347, %v354
        %s357 = scalar_lea.vmem %s114, 8 [#allocation1]
        %358 = vst [vmem:[%s357] sm:$0xff] %v356
        %s359 = sand.u32 %s8, 1
        %s360 = sand.u32 %s8, 1
        %s361 = smul.addr %s360, 16
        %s362 = scalar_lea.vmem [#allocation1], %s361
        %s363 = sadd.s32 %s17, %s16
        %s364 = smul.addr %s15, 2
        %s365 = sadd.s32 %s363, %s364
        %s366 = smul.addr %s14, 2
        %s367 = sadd.s32 %s365, %s366
        %s368 = smul.addr %s367, 8
        %s369 = scalar_lea.vmem %s1, %s368
        // Predicated region
        $region55: #{custom-call.10} parent=53 // pred_check
          _
        $region56: #{custom-call.10} parent=53 // pred_check_branch
          %371 = sbr.rel (0) target = $region58
        $region57: #{custom-call.10} parent=53 // pred_region
          // Predicated region
          $region59: #{custom-call.10} parent=57 // pred_check
            _
          $region60: #{custom-call.10} parent=57 // pred_check_branch
            %373 = sbr.rel (0) target = $region62
          $region61: #{custom-call.10} parent=57 // pred_region
            // Predicated region
            $region74: #{custom-call.10} parent=61 // pred_check
              _
            $region75: #{custom-call.10} parent=61 // pred_check_branch
              %391 = sbr.rel (0) target = $region77
            $region76: #{custom-call.10} parent=61 // pred_region
              loop: start=0, step=1, limit=1
              $region78: #{custom-call.10} parent=76 // loop_pre_header
                _
              $region79: #{custom-call.10} parent=76 // loop_header
                %s393 = sphi 0, %s397
                %p394 = scmp.ge.s32.totalorder %s393, 1
                %s398 = sphi %s362, %s362
                %s399 = sphi %s369, %s369
              $region80: #{custom-call.10} parent=76 // loop_header_branch
                %396 = sbr.rel (%p394) target = $region84
              $region81: #{custom-call.10} parent=76 // loop_body
                %v400 = vld [vmem:[%s398] sm:$0xff]
                %401 = vst [vmem:[%s399] sm:$0xff] %v400
                %v402 = vld [vmem:[%s398 + $0x8] sm:$0xff]
                %403 = vst [vmem:[%s399 + $0x8] sm:$0xff] %v402
              $region82: #{custom-call.10} parent=76 // loop_footer
                %s397 = sadd.s32 1, %s393
              $region83: #{custom-call.10} parent=76 // loop_footer_branch
                %392 = sbr.rel target = $region79
              $region84: #{custom-call.10} parent=76 // loop_exit
                _
            $region77: #{custom-call.10} parent=61 // pred_fallthru
              _
            // Predicated region
            $region85: #{custom-call.10} parent=61 // pred_check
              _
            $region86: #{custom-call.10} parent=61 // pred_check_branch
              %405 = sbr.rel target = $region88
            $region87: #{custom-call.10} parent=61 // pred_region
              _
            $region88: #{custom-call.10} parent=61 // pred_fallthru
              _
          $region62: #{custom-call.10} parent=57 // pred_fallthru
            _
          // Predicated region
          $region63: #{custom-call.10} parent=57 // pred_check
            _
          $region64: #{custom-call.10} parent=57 // pred_check_branch
            %375 = sbr.rel target = $region66
          $region65: #{custom-call.10} parent=57 // pred_region
            %s377 = ssub.s32 256, 1
            loop: start=0, step=1, limit=1
            $region67: #{custom-call.10} parent=65 // loop_pre_header
              _
            $region68: #{custom-call.10} parent=65 // loop_header
              %s379 = sphi 0, %s383
              %p380 = scmp.ge.s32.totalorder %s379, 1
              %s384 = sphi %s362, %s362
              %s385 = sphi %s369, %s369
            $region69: #{custom-call.10} parent=65 // loop_header_branch
              %382 = sbr.rel (%p380) target = $region73
            $region70: #{custom-call.10} parent=65 // loop_body
              %v386 = vld [vmem:[%s384] sm:%s377]
              %387 = vst [vmem:[%s385] sm:%s377] %v386
              %v388 = vld [vmem:[%s384 + $0x8] sm:%s377]
              %389 = vst [vmem:[%s385 + $0x8] sm:%s377] %v388
            $region71: #{custom-call.10} parent=65 // loop_footer
              %s383 = sadd.s32 1, %s379
            $region72: #{custom-call.10} parent=65 // loop_footer_branch
              %378 = sbr.rel target = $region68
            $region73: #{custom-call.10} parent=65 // loop_exit
              _
          $region66: #{custom-call.10} parent=57 // pred_fallthru
            _
        $region58: #{custom-call.10} parent=53 // pred_fallthru
          _
        %406 = vnop
      $region54: #{custom-call.10} parent=5 // pred_fallthru
        _
      %p407 = scmp.le.s32.totalorder 2, %s3
      // Predicated region
      $region89: #{custom-call.10} parent=5 // pred_check
        %p408 = pneg %p407
      $region90: #{custom-call.10} parent=5 // pred_check_branch
        %410 = sbr.rel (%p408) target = $region92
      $region91: #{custom-call.10} parent=5 // pred_region
        %s411 = ssub.s32 %s3, 2
        %s412 = sand.u32 %s9, 1
        %s413 = sand.u32 %s9, 1
        %s414 = smul.addr %s413, 16
        %s415 = scalar_lea.vmem [#allocation1], %s414
      $region92: #{custom-call.10} parent=5 // pred_fallthru
        _
    $region6: #{custom-call.10} parent=1 // loop_footer
      %s7 = sadd.s32 1, %s3
    $region7: #{custom-call.10} parent=1 // loop_footer_branch
      %2 = sbr.rel target = $region3
    $region8: #{custom-call.10} parent=1 // loop_exit
      _

// kernel: custom-call.9
$region0: #{custom-call.9}
  %s0 = inlined_call_operand.vmem [shape: f32[4,1,16,16], index: 0, kind: input, shape index: {}]
  %s1 = inlined_call_operand.vmem [shape: f32[4,1,16,16], index: 1, kind: output, shape index: {}]
  $region1: #{custom-call.9} parent=0
    #allocation0 [shape = 'u8[16384]{0}', space=vmem, size = 0x4000, scoped, tag = 'operand span for operand 0']
    #allocation1 [shape = 'u8[16384]{0}', space=vmem, size = 0x4000, scoped, tag = 'operand span for operand 1']
    loop: start=0, step=1, limit=6
    $region2: #{custom-call.9} parent=1 // loop_pre_header
      _
    $region3: #{custom-call.9} parent=1 // loop_header
      %s3 = sphi 0, %s7
      %p4 = scmp.ge.s32.totalorder %s3, 6
      %s10 = sphi 0, %s36
      %s11 = sphi 0, %s32
      %s12 = sphi 0, %s28
      %s13 = sphi 0, %s24
      %s14 = sphi 0, %s10
      %s15 = sphi 0, %s11
      %s16 = sphi 0, %s12
      %s17 = sphi 0, %s13
      %s18 = sphi 0, %s14
      %s19 = sphi 0, %s15
      %s20 = sphi 0, %s16
      %s21 = sphi 0, %s17
    $region4: #{custom-call.9} parent=1 // loop_header_branch
      %6 = sbr.rel (%p4) target = $region8
    $region5: #{custom-call.9} parent=1 // loop_body
      %s8 = ssub.s32 %s3, 1
      %s9 = ssub.s32 %s3, 2
      %s22 = sadd.s32 1, %s13
      %p23 = scmp.ge.s32.totalorder %s22, 1
      %s24 = scalar_select %p23, 0, %s22
      %s25 = sadd.s32 1, %s12
      %s26 = scalar_select %p23, %s25, %s12
      %p27 = scmp.ge.s32.totalorder %s26, 1
      %s28 = scalar_select %p27, 0, %s26
      %s29 = sadd.s32 1, %s11
      %s30 = scalar_select %p27, %s29, %s11
      %p31 = scmp.ge.s32.totalorder %s30, 1
      %s32 = scalar_select %p31, 0, %s30
      %s33 = sadd.s32 1, %s10
      %s34 = scalar_select %p31, %s33, %s10
      %p35 = scmp.ge.s32.totalorder %s34, 4
      %s36 = scalar_select %p35, 0, %s34
      %p37 = scmp.le.s32.totalorder 1, %s3
      %p38 = scmp.lt.s32.totalorder %s3, 5
      %p39 = pnand %p37, %p38
      %p40 = pneg %p39
      // Predicated region
      $region9: #{custom-call.9} parent=5 // pred_check
        _
      $region10: #{custom-call.9} parent=5 // pred_check_branch
        %42 = sbr.rel (%p39) target = $region12
      $region11: #{custom-call.9} parent=5 // pred_region
        %s43 = ssub.s32 %s3, 1
      $region12: #{custom-call.9} parent=5 // pred_fallthru
        _
      %p44 = scmp.lt.s32.totalorder %s3, 4
      // Predicated region
      $region13: #{custom-call.9} parent=5 // pred_check
        %p45 = pneg %p44
      $region14: #{custom-call.9} parent=5 // pred_check_branch
        %47 = sbr.rel (%p45) target = $region16
      $region15: #{custom-call.9} parent=5 // pred_region
        %s48 = sand.u32 %s3, 1
        %s49 = sand.u32 %s3, 1
        %s50 = smul.addr %s49, 16
        %s51 = scalar_lea.vmem [#allocation0], %s50
        %s52 = sadd.s32 %s13, %s12
        %s53 = smul.addr %s11, 2
        %s54 = sadd.s32 %s52, %s53
        %s55 = smul.addr %s10, 2
        %s56 = sadd.s32 %s54, %s55
        %s57 = smul.addr %s56, 8
        %s58 = scalar_lea.vmem %s0, %s57
        // Predicated region
        $region17: #{custom-call.9} parent=15 // pred_check
          _
        $region18: #{custom-call.9} parent=15 // pred_check_branch
          %60 = sbr.rel (0) target = $region20
        $region19: #{custom-call.9} parent=15 // pred_region
          // Predicated region
          $region21: #{custom-call.9} parent=19 // pred_check
            _
          $region22: #{custom-call.9} parent=19 // pred_check_branch
            %62 = sbr.rel (0) target = $region24
          $region23: #{custom-call.9} parent=19 // pred_region
            // Predicated region
            $region36: #{custom-call.9} parent=23 // pred_check
              _
            $region37: #{custom-call.9} parent=23 // pred_check_branch
              %80 = sbr.rel (0) target = $region39
            $region38: #{custom-call.9} parent=23 // pred_region
              loop: start=0, step=1, limit=1
              $region40: #{custom-call.9} parent=38 // loop_pre_header
                _
              $region41: #{custom-call.9} parent=38 // loop_header
                %s82 = sphi 0, %s86
                %p83 = scmp.ge.s32.totalorder %s82, 1
                %s87 = sphi %s58, %s58
                %s88 = sphi %s51, %s51
              $region42: #{custom-call.9} parent=38 // loop_header_branch
                %85 = sbr.rel (%p83) target = $region46
              $region43: #{custom-call.9} parent=38 // loop_body
                %v89 = vld [vmem:[%s87] sm:$0xff]
                %90 = vst [vmem:[%s88] sm:$0xff] %v89
                %v91 = vld [vmem:[%s87 + $0x8] sm:$0xff]
                %92 = vst [vmem:[%s88 + $0x8] sm:$0xff] %v91
              $region44: #{custom-call.9} parent=38 // loop_footer
                %s86 = sadd.s32 1, %s82
              $region45: #{custom-call.9} parent=38 // loop_footer_branch
                %81 = sbr.rel target = $region41
              $region46: #{custom-call.9} parent=38 // loop_exit
                _
            $region39: #{custom-call.9} parent=23 // pred_fallthru
              _
            // Predicated region
            $region47: #{custom-call.9} parent=23 // pred_check
              _
            $region48: #{custom-call.9} parent=23 // pred_check_branch
              %94 = sbr.rel target = $region50
            $region49: #{custom-call.9} parent=23 // pred_region
              _
            $region50: #{custom-call.9} parent=23 // pred_fallthru
              _
          $region24: #{custom-call.9} parent=19 // pred_fallthru
            _
          // Predicated region
          $region25: #{custom-call.9} parent=19 // pred_check
            _
          $region26: #{custom-call.9} parent=19 // pred_check_branch
            %64 = sbr.rel target = $region28
          $region27: #{custom-call.9} parent=19 // pred_region
            %s66 = ssub.s32 256, 1
            loop: start=0, step=1, limit=1
            $region29: #{custom-call.9} parent=27 // loop_pre_header
              _
            $region30: #{custom-call.9} parent=27 // loop_header
              %s68 = sphi 0, %s72
              %p69 = scmp.ge.s32.totalorder %s68, 1
              %s73 = sphi %s58, %s58
              %s74 = sphi %s51, %s51
            $region31: #{custom-call.9} parent=27 // loop_header_branch
              %71 = sbr.rel (%p69) target = $region35
            $region32: #{custom-call.9} parent=27 // loop_body
              %v75 = vld [vmem:[%s73] sm:%s66]
              %76 = vst [vmem:[%s74] sm:%s66] %v75
              %v77 = vld [vmem:[%s73 + $0x8] sm:%s66]
              %78 = vst [vmem:[%s74 + $0x8] sm:%s66] %v77
            $region33: #{custom-call.9} parent=27 // loop_footer
              %s72 = sadd.s32 1, %s68
            $region34: #{custom-call.9} parent=27 // loop_footer_branch
              %67 = sbr.rel target = $region30
            $region35: #{custom-call.9} parent=27 // loop_exit
              _
          $region28: #{custom-call.9} parent=19 // pred_fallthru
            _
        $region20: #{custom-call.9} parent=15 // pred_fallthru
          _
        %95 = vnop
      $region16: #{custom-call.9} parent=5 // pred_fallthru
        _
      %p96 = scmp.le.s32.totalorder 1, %s3
      %p97 = scmp.lt.s32.totalorder %s3, 5
      %p98 = pnand %p96, %p97
      %p99 = pneg %p98
      // Predicated region
      $region51: #{custom-call.9} parent=5 // pred_check
        _
      $region52: #{custom-call.9} parent=5 // pred_check_branch
        %101 = sbr.rel (%p98) target = $region54
      $region53: #{custom-call.9} parent=5 // pred_region
        #allocation2 [shape = 'f32[16,16]{1,0}', space=vmem, size = 0x2000, scoped, tag = 'rescaled input a']
        %s102 = ssub.s32 %s3, 1
        %s103 = sand.u32 %s8, 1
        %s104 = sand.u32 %s8, 1
        %s105 = smul.addr %s104, 16
        %s106 = scalar_lea.vmem [#allocation0], %s105
        %s107 = sand.u32 %s8, 1
        %s108 = sand.u32 %s8, 1
        %s109 = smul.addr %s108, 16
        %s110 = scalar_lea.vmem [#allocation0], %s109
        %s111 = sand.u32 %s8, 1
        %s112 = sand.u32 %s8, 1
        %s113 = smul.addr %s112, 16
        %s114 = scalar_lea.vmem [#allocation1], %s113
        %v115 = vlaneseq
        %v116 = vand.u32 %v115, 127
        %vm117 = vcmp.lt.s32.totalorder %v116, 16
        %v118 = vlaneseq
        %v119 = vshrl.u32 %v118, 7
        %vm121 = vcmp.eq.s32.totalorder %v119, %v116
        %v122 = vld [vmem:[%s106] sm:$0xff]
        %v123 = vsel %vm121, %v122, 0.0
        %124 = vadd.xlane.f32.xlu0 %v123
        %v125 = vpop.xlane.xlu0 %124
        %vm126 = vcmp.le.s32.totalorder %v119, %v116
        %vm127 = vmand %vm126, %vm117
        %v128 = vsel %vm127, %v122, 0.0
        %v129 = vrcp.pop %v125
        %v130 = vmul.f32 %v128, %v129
        %131 = vst [vmem:[#allocation2] sm:$0xff] %v130
        %s132 = scalar_lea.vmem %s106, 8 [#allocation0]
        %s133 = scalar_lea.vmem [#allocation2], 8
        %v134 = vlaneseq
        %v135 = vshrl.u32 %v134, 7
        %v136 = vadd.s32 %v135, 8
        %vm137 = vcmp.eq.s32.totalorder %v136, %v116
        %v138 = vld [vmem:[%s132] sm:$0xff]
        %v139 = vsel %vm137, %v138, 0.0
        %140 = vadd.xlane.f32.xlu0 %v139
        %v141 = vpop.xlane.xlu0 %140
        %vm142 = vcmp.le.s32.totalorder %v136, %v116
        %vm143 = vmand %vm142, %vm117
        %v144 = vsel %vm143, %v138, 0.0
        %v145 = vrcp.pop %v141
        %v146 = vmul.f32 %v144, %v145
        %147 = vst [vmem:[%s133] sm:$0xff] %v146
        %v148 = vlaneseq
        %v149 = vand.u32 %v148, 127
        %v150 = vlaneseq
        %v151 = vshrl.u32 %v150, 7
        %vm153 = vcmp.eq.s32.totalorder %v149, %v151
        %v154 = vsel %vm153, -1.0, 0.0
        %v155 = vlaneseq
        %v156 = vand.u32 %v155, 127
        %v157 = vlaneseq
        %v158 = vshrl.u32 %v157, 7
        %v159 = vadd.s32 %v158, 8
        %vm160 = vcmp.eq.s32.totalorder %v156, %v159
        %v161 = vlaneseq
        %v162 = vand.u32 %v161, 127
        %vm163 = vcmp.eq.s32.totalorder %v162, 15
        %v164 = vsel %vm163, 1.0, -1.0
        %v165 = vsel %vm160, %v164, 0.0
        %s166 = scalar_lea.vmem [#allocation2], 14
        %v167 = vld [vmem:[%s166] ss:$0 sm:$0xff]
        %v168 = vxor.u32 %v167, 2147483648
        %v169 = vlaneseq
        %v170 = vand.u32 %v169, 127
        %vm171 = vcmp.eq.s32.totalorder %v170, 14
        %v172 = vmul.f32 %v168, %v165
        %173 = vadd.xlane.f32.xlu0 %v172
        %v174 = vpop.xlane.xlu0 %173
        %v175 = vsel %vm171, %v174, %v165
        %s176 = scalar_lea.vmem [#allocation2], 13
        %v177 = vld [vmem:[%s176] ss:$0 sm:$0xff]
        %v178 = vxor.u32 %v177, 2147483648
        %v179 = vlaneseq
        %v180 = vand.u32 %v179, 127
        %vm181 = vcmp.eq.s32.totalorder %v180, 13
        %v182 = vmul.f32 %v178, %v175
        %183 = vadd.xlane.f32.xlu0 %v182
        %v184 = vpop.xlane.xlu0 %183
        %v185 = vsel %vm181, %v184, %v175
        %s186 = scalar_lea.vmem [#allocation2], 12
        %v187 = vld [vmem:[%s186] ss:$0 sm:$0xff]
        %v188 = vxor.u32 %v187, 2147483648
        %v189 = vlaneseq
        %v190 = vand.u32 %v189, 127
        %vm191 = vcmp.eq.s32.totalorder %v190, 12
        %v192 = vmul.f32 %v188, %v185
        %193 = vadd.xlane.f32.xlu0 %v192
        %v194 = vpop.xlane.xlu0 %193
        %v195 = vsel %vm191, %v194, %v185
        %s196 = scalar_lea.vmem [#allocation2], 11
        %v197 = vld [vmem:[%s196] ss:$0 sm:$0xff]
        %v198 = vxor.u32 %v197, 2147483648
        %v199 = vlaneseq
        %v200 = vand.u32 %v199, 127
        %vm201 = vcmp.eq.s32.totalorder %v200, 11
        %v202 = vmul.f32 %v198, %v195
        %203 = vadd.xlane.f32.xlu0 %v202
        %v204 = vpop.xlane.xlu0 %203
        %v205 = vsel %vm201, %v204, %v195
        %s206 = scalar_lea.vmem [#allocation2], 10
        %v207 = vld [vmem:[%s206] ss:$0 sm:$0xff]
        %v208 = vxor.u32 %v207, 2147483648
        %v209 = vlaneseq
        %v210 = vand.u32 %v209, 127
        %vm211 = vcmp.eq.s32.totalorder %v210, 10
        %v212 = vmul.f32 %v208, %v205
        %213 = vadd.xlane.f32.xlu0 %v212
        %v214 = vpop.xlane.xlu0 %213
        %v215 = vsel %vm211, %v214, %v205
        %s216 = scalar_lea.vmem [#allocation2], 9
        %v217 = vld [vmem:[%s216] ss:$0 sm:$0xff]
        %v218 = vxor.u32 %v217, 2147483648
        %v219 = vlaneseq
        %v220 = vand.u32 %v219, 127
        %vm221 = vcmp.eq.s32.totalorder %v220, 9
        %v222 = vmul.f32 %v218, %v215
        %223 = vadd.xlane.f32.xlu0 %v222
        %v224 = vpop.xlane.xlu0 %223
        %v225 = vsel %vm221, %v224, %v215
        %s226 = scalar_lea.vmem [#allocation2], 8
        %v227 = vld [vmem:[%s226] ss:$0 sm:$0xff]
        %v228 = vxor.u32 %v227, 2147483648
        %v229 = vlaneseq
        %v230 = vand.u32 %v229, 127
        %vm231 = vcmp.eq.s32.totalorder %v230, 8
        %v232 = vmul.f32 %v228, %v225
        %233 = vadd.xlane.f32.xlu0 %v232
        %v234 = vpop.xlane.xlu0 %233
        %v235 = vsel %vm231, %v234, %v225
        %s236 = scalar_lea.vmem [#allocation2], 7
        %v237 = vld [vmem:[%s236] ss:$0 sm:$0xff]
        %v238 = vxor.u32 %v237, 2147483648
        %v239 = vlaneseq
        %v240 = vand.u32 %v239, 127
        %vm241 = vcmp.eq.s32.totalorder %v240, 7
        %v242 = vmul.f32 %v238, %v154
        %243 = vadd.xlane.f32.xlu0 %v242
        %v244 = vpop.xlane.xlu0 %243
        %v245 = vsel %vm241, %v244, %v154
        %v246 = vmul.f32 %v238, %v235
        %247 = vadd.xlane.f32.xlu0 %v246
        %v248 = vpop.xlane.xlu0 %247
        %v249 = vsel %vm241, %v248, %v235
        %s250 = scalar_lea.vmem [#allocation2], 6
        %v251 = vld [vmem:[%s250] ss:$0 sm:$0xff]
        %v252 = vxor.u32 %v251, 2147483648
        %v253 = vlaneseq
        %v254 = vand.u32 %v253, 127
        %vm255 = vcmp.eq.s32.totalorder %v254, 6
        %v256 = vmul.f32 %v252, %v245
        %257 = vadd.xlane.f32.xlu0 %v256
        %v258 = vpop.xlane.xlu0 %257
        %v259 = vsel %vm255, %v258, %v245
        %v260 = vmul.f32 %v252, %v249
        %261 = vadd.xlane.f32.xlu0 %v260
        %v262 = vpop.xlane.xlu0 %261
        %v263 = vsel %vm255, %v262, %v249
        %s264 = scalar_lea.vmem [#allocation2], 5
        %v265 = vld [vmem:[%s264] ss:$0 sm:$0xff]
        %v266 = vxor.u32 %v265, 2147483648
        %v267 = vlaneseq
        %v268 = vand.u32 %v267, 127
        %vm269 = vcmp.eq.s32.totalorder %v268, 5
        %v270 = vmul.f32 %v266, %v259
        %271 = vadd.xlane.f32.xlu0 %v270
        %v272 = vpop.xlane.xlu0 %271
        %v273 = vsel %vm269, %v272, %v259
        %v274 = vmul.f32 %v266, %v263
        %275 = vadd.xlane.f32.xlu0 %v274
        %v276 = vpop.xlane.xlu0 %275
        %v277 = vsel %vm269, %v276, %v263
        %s278 = scalar_lea.vmem [#allocation2], 4
        %v279 = vld [vmem:[%s278] ss:$0 sm:$0xff]
        %v280 = vxor.u32 %v279, 2147483648
        %v281 = vlaneseq
        %v282 = vand.u32 %v281, 127
        %vm283 = vcmp.eq.s32.totalorder %v282, 4
        %v284 = vmul.f32 %v280, %v273
        %285 = vadd.xlane.f32.xlu0 %v284
        %v286 = vpop.xlane.xlu0 %285
        %v287 = vsel %vm283, %v286, %v273
        %v288 = vmul.f32 %v280, %v277
        %289 = vadd.xlane.f32.xlu0 %v288
        %v290 = vpop.xlane.xlu0 %289
        %v291 = vsel %vm283, %v290, %v277
        %s292 = scalar_lea.vmem [#allocation2], 3
        %v293 = vld [vmem:[%s292] ss:$0 sm:$0xff]
        %v294 = vxor.u32 %v293, 2147483648
        %v295 = vlaneseq
        %v296 = vand.u32 %v295, 127
        %vm297 = vcmp.eq.s32.totalorder %v296, 3
        %v298 = vmul.f32 %v294, %v287
        %299 = vadd.xlane.f32.xlu0 %v298
        %v300 = vpop.xlane.xlu0 %299
        %v301 = vsel %vm297, %v300, %v287
        %v302 = vmul.f32 %v294, %v291
        %303 = vadd.xlane.f32.xlu0 %v302
        %v304 = vpop.xlane.xlu0 %303
        %v305 = vsel %vm297, %v304, %v291
        %s306 = scalar_lea.vmem [#allocation2], 2
        %v307 = vld [vmem:[%s306] ss:$0 sm:$0xff]
        %v308 = vxor.u32 %v307, 2147483648
        %v309 = vlaneseq
        %v310 = vand.u32 %v309, 127
        %vm311 = vcmp.eq.s32.totalorder %v310, 2
        %v312 = vmul.f32 %v308, %v301
        %313 = vadd.xlane.f32.xlu0 %v312
        %v314 = vpop.xlane.xlu0 %313
        %v315 = vsel %vm311, %v314, %v301
        %v316 = vmul.f32 %v308, %v305
        %317 = vadd.xlane.f32.xlu0 %v316
        %v318 = vpop.xlane.xlu0 %317
        %v319 = vsel %vm311, %v318, %v305
        %s320 = scalar_lea.vmem [#allocation2], 1
        %v321 = vld [vmem:[%s320] ss:$0 sm:$0xff]
        %v322 = vxor.u32 %v321, 2147483648
        %v323 = vlaneseq
        %v324 = vand.u32 %v323, 127
        %vm325 = vcmp.eq.s32.totalorder %v324, 1
        %v326 = vmul.f32 %v322, %v315
        %327 = vadd.xlane.f32.xlu0 %v326
        %v328 = vpop.xlane.xlu0 %327
        %v329 = vsel %vm325, %v328, %v315
        %v330 = vmul.f32 %v322, %v319
        %331 = vadd.xlane.f32.xlu0 %v330
        %v332 = vpop.xlane.xlu0 %331
        %v333 = vsel %vm325, %v332, %v319
        %v334 = vld [vmem:[#allocation2] ss:$0 sm:$0xff]
        %v335 = vxor.u32 %v334, 2147483648
        %v336 = vlaneseq
        %v337 = vand.u32 %v336, 127
        %vm338 = vcmp.eq.s32.totalorder %v337, 0
        %v339 = vmul.f32 %v335, %v329
        %340 = vadd.xlane.f32.xlu0 %v339
        %v341 = vpop.xlane.xlu0 %340
        %v342 = vsel %vm338, %v341, %v329
        %v343 = vmul.f32 %v335, %v333
        %344 = vadd.xlane.f32.xlu0 %v343
        %v345 = vpop.xlane.xlu0 %344
        %v346 = vsel %vm338, %v345, %v333
        %v347 = vrcp.pop %v125
        %v348 = vmul.f32 %v342, %v347
        %vm349 = vweird.f32 %v125
        %v350 = vsel %vm349, %v342, %v348
        %351 = vst [vmem:[%s114] sm:$0xff] %v350
        %v352 = vrcp.pop %v141
        %v353 = vmul.f32 %v346, %v352
        %vm354 = vweird.f32 %v141
        %v355 = vsel %vm354, %v346, %v353
        %s356 = scalar_lea.vmem %s114, 8 [#allocation1]
        %357 = vst [vmem:[%s356] sm:$0xff] %v355
        %s358 = sand.u32 %s8, 1
        %s359 = sand.u32 %s8, 1
        %s360 = smul.addr %s359, 16
        %s361 = scalar_lea.vmem [#allocation1], %s360
        %s362 = sadd.s32 %s17, %s16
        %s363 = smul.addr %s15, 2
        %s364 = sadd.s32 %s362, %s363
        %s365 = smul.addr %s14, 2
        %s366 = sadd.s32 %s364, %s365
        %s367 = smul.addr %s366, 8
        %s368 = scalar_lea.vmem %s1, %s367
        // Predicated region
        $region55: #{custom-call.9} parent=53 // pred_check
          _
        $region56: #{custom-call.9} parent=53 // pred_check_branch
          %370 = sbr.rel (0) target = $region58
        $region57: #{custom-call.9} parent=53 // pred_region
          // Predicated region
          $region59: #{custom-call.9} parent=57 // pred_check
            _
          $region60: #{custom-call.9} parent=57 // pred_check_branch
            %372 = sbr.rel (0) target = $region62
          $region61: #{custom-call.9} parent=57 // pred_region
            // Predicated region
            $region74: #{custom-call.9} parent=61 // pred_check
              _
            $region75: #{custom-call.9} parent=61 // pred_check_branch
              %390 = sbr.rel (0) target = $region77
            $region76: #{custom-call.9} parent=61 // pred_region
              loop: start=0, step=1, limit=1
              $region78: #{custom-call.9} parent=76 // loop_pre_header
                _
              $region79: #{custom-call.9} parent=76 // loop_header
                %s392 = sphi 0, %s396
                %p393 = scmp.ge.s32.totalorder %s392, 1
                %s397 = sphi %s361, %s361
                %s398 = sphi %s368, %s368
              $region80: #{custom-call.9} parent=76 // loop_header_branch
                %395 = sbr.rel (%p393) target = $region84
              $region81: #{custom-call.9} parent=76 // loop_body
                %v399 = vld [vmem:[%s397] sm:$0xff]
                %400 = vst [vmem:[%s398] sm:$0xff] %v399
                %v401 = vld [vmem:[%s397 + $0x8] sm:$0xff]
                %402 = vst [vmem:[%s398 + $0x8] sm:$0xff] %v401
              $region82: #{custom-call.9} parent=76 // loop_footer
                %s396 = sadd.s32 1, %s392
              $region83: #{custom-call.9} parent=76 // loop_footer_branch
                %391 = sbr.rel target = $region79
              $region84: #{custom-call.9} parent=76 // loop_exit
                _
            $region77: #{custom-call.9} parent=61 // pred_fallthru
              _
            // Predicated region
            $region85: #{custom-call.9} parent=61 // pred_check
              _
            $region86: #{custom-call.9} parent=61 // pred_check_branch
              %404 = sbr.rel target = $region88
            $region87: #{custom-call.9} parent=61 // pred_region
              _
            $region88: #{custom-call.9} parent=61 // pred_fallthru
              _
          $region62: #{custom-call.9} parent=57 // pred_fallthru
            _
          // Predicated region
          $region63: #{custom-call.9} parent=57 // pred_check
            _
          $region64: #{custom-call.9} parent=57 // pred_check_branch
            %374 = sbr.rel target = $region66
          $region65: #{custom-call.9} parent=57 // pred_region
            %s376 = ssub.s32 256, 1
            loop: start=0, step=1, limit=1
            $region67: #{custom-call.9} parent=65 // loop_pre_header
              _
            $region68: #{custom-call.9} parent=65 // loop_header
              %s378 = sphi 0, %s382
              %p379 = scmp.ge.s32.totalorder %s378, 1
              %s383 = sphi %s361, %s361
              %s384 = sphi %s368, %s368
            $region69: #{custom-call.9} parent=65 // loop_header_branch
              %381 = sbr.rel (%p379) target = $region73
            $region70: #{custom-call.9} parent=65 // loop_body
              %v385 = vld [vmem:[%s383] sm:%s376]
              %386 = vst [vmem:[%s384] sm:%s376] %v385
              %v387 = vld [vmem:[%s383 + $0x8] sm:%s376]
              %388 = vst [vmem:[%s384 + $0x8] sm:%s376] %v387
            $region71: #{custom-call.9} parent=65 // loop_footer
              %s382 = sadd.s32 1, %s378
            $region72: #{custom-call.9} parent=65 // loop_footer_branch
              %377 = sbr.rel target = $region68
            $region73: #{custom-call.9} parent=65 // loop_exit
              _
          $region66: #{custom-call.9} parent=57 // pred_fallthru
            _
        $region58: #{custom-call.9} parent=53 // pred_fallthru
          _
        %405 = vnop
      $region54: #{custom-call.9} parent=5 // pred_fallthru
        _
      %p406 = scmp.le.s32.totalorder 2, %s3
      // Predicated region
      $region89: #{custom-call.9} parent=5 // pred_check
        %p407 = pneg %p406
      $region90: #{custom-call.9} parent=5 // pred_check_branch
        %409 = sbr.rel (%p407) target = $region92
      $region91: #{custom-call.9} parent=5 // pred_region
        %s410 = ssub.s32 %s3, 2
        %s411 = sand.u32 %s9, 1
        %s412 = sand.u32 %s9, 1
        %s413 = smul.addr %s412, 16
        %s414 = scalar_lea.vmem [#allocation1], %s413
      $region92: #{custom-call.9} parent=5 // pred_fallthru
        _
    $region6: #{custom-call.9} parent=1 // loop_footer
      %s7 = sadd.s32 1, %s3
    $region7: #{custom-call.9} parent=1 // loop_footer_branch
      %2 = sbr.rel target = $region3
    $region8: #{custom-call.9} parent=1 // loop_exit
      _

// kernel: w_unfolding_forward.1
$region0: #{w_unfolding_forward.1}
  #allocation0 [shape = 'u32[]', space=smem, size = 0x4, offset = 0x4, fixed_abs, tag = 'smem constant byte address 0x4 - core index']
  #allocation1 [shape = 'u32[144,128]{1,0:T(1,128)}', space=vmem, size = 0x12000, scoped, tag = 'internal scratch']
  %s0 = inlined_call_operand.vmem [shape: f32[4,16,8], index: 0, kind: input, shape index: {}]
  %s1 = inlined_call_operand.vmem [shape: f32[4,2,8,8], index: 1, kind: input, shape index: {}]
  %s2 = inlined_call_operand.vmem [shape: f32[8,64], index: 2, kind: output, shape index: {}]
  %s3 = sld [smem:[#allocation0]]
  $region18: #{w_unfolding_forward.1} parent=0
    _
  %s5 = ssub.s32 1, %s3
  %s6 = scalar_select 0, %s5, %s3
  // Predicated region
  $region2: #{w_unfolding_forward.1} parent=0 // pred_check
    _
  $region3: #{w_unfolding_forward.1} parent=0 // pred_check_branch
    %8 = sbr.rel (0) target = $region5
  $region4: #{w_unfolding_forward.1} parent=0 // pred_region
    _
  $region5: #{w_unfolding_forward.1} parent=0 // pred_fallthru
    _
  // Predicated region
  $region6: #{w_unfolding_forward.1} parent=0 // pred_check
    _
  $region7: #{w_unfolding_forward.1} parent=0 // pred_check_branch
    %10 = sbr.rel (0) target = $region9
  $region8: #{w_unfolding_forward.1} parent=0 // pred_region
    _
  $region9: #{w_unfolding_forward.1} parent=0 // pred_fallthru
    _
  %v11 = vld [vmem:[%s0] sm:$0xff]
  %v12 = vld [vmem:[%s0 + $0x8] sm:$0xff]
  %v13 = vld [vmem:[%s1] sm:$0xff]
  %s14 = scalar_lea.vmem %s1, 8
  %v15 = vld [vmem:[%s14] sm:$0xff]
  %16 = vxpose.xlu0.b32.start [1/16] %v11, 128
  %17 = vxpose.xlu0.b32.cont [2/16] 0.0, 128
  %18 = vxpose.xlu0.b32.cont [3/16] 0.0, 128
  %19 = vxpose.xlu0.b32.cont [4/16] 0.0, 128
  %20 = vxpose.xlu0.b32.cont [5/16] 0.0, 128
  %21 = vxpose.xlu0.b32.cont [6/16] 0.0, 128
  %22 = vxpose.xlu0.b32.cont [7/16] 0.0, 128
  %23 = vxpose.xlu0.b32.cont [8/16] 0.0, 128
  %24 = vxpose.xlu0.b32.cont [9/16] 0.0, 128
  %25 = vxpose.xlu0.b32.cont [10/16] 0.0, 128
  %26 = vxpose.xlu0.b32.cont [11/16] 0.0, 128
  %27 = vxpose.xlu0.b32.cont [12/16] 0.0, 128
  %28 = vxpose.xlu0.b32.cont [13/16] 0.0, 128
  %29 = vxpose.xlu0.b32.cont [14/16] 0.0, 128
  %30 = vxpose.xlu0.b32.cont [15/16] 0.0, 128
  %31 = vxpose.xlu0.b32.end [16/16] 0.0, 128
  %v32 = vpop.trf.xlu0
  %v33 = vpop.trf.xlu0
  %v34 = vpop.trf.xlu0
  %v35 = vpop.trf.xlu0
  %v36 = vpop.trf.xlu0
  %v37 = vpop.trf.xlu0
  %v38 = vpop.trf.xlu0
  %v39 = vpop.trf.xlu0
  %v40 = vpop.trf.xlu0
  %v41 = vpop.trf.xlu0
  %v42 = vpop.trf.xlu0
  %v43 = vpop.trf.xlu0
  %v44 = vpop.trf.xlu0
  %v45 = vpop.trf.xlu0
  %v46 = vpop.trf.xlu0
  %v47 = vpop.trf.xlu0
  %v48 = vadd.f32 %v11, %v32
  %v49 = vmul.f32 %v48, 0.5
  %50 = vxpose.xlu0.b32.start [1/16] %v13, 128
  %51 = vxpose.xlu0.b32.cont [2/16] 0.0, 128
  %52 = vxpose.xlu0.b32.cont [3/16] 0.0, 128
  %53 = vxpose.xlu0.b32.cont [4/16] 0.0, 128
  %54 = vxpose.xlu0.b32.cont [5/16] 0.0, 128
  %55 = vxpose.xlu0.b32.cont [6/16] 0.0, 128
  %56 = vxpose.xlu0.b32.cont [7/16] 0.0, 128
  %57 = vxpose.xlu0.b32.cont [8/16] 0.0, 128
  %58 = vxpose.xlu0.b32.cont [9/16] 0.0, 128
  %59 = vxpose.xlu0.b32.cont [10/16] 0.0, 128
  %60 = vxpose.xlu0.b32.cont [11/16] 0.0, 128
  %61 = vxpose.xlu0.b32.cont [12/16] 0.0, 128
  %62 = vxpose.xlu0.b32.cont [13/16] 0.0, 128
  %63 = vxpose.xlu0.b32.cont [14/16] 0.0, 128
  %64 = vxpose.xlu0.b32.cont [15/16] 0.0, 128
  %65 = vxpose.xlu0.b32.end [16/16] 0.0, 128
  %v66 = vpop.trf.xlu0
  %v67 = vpop.trf.xlu0
  %v68 = vpop.trf.xlu0
  %v69 = vpop.trf.xlu0
  %v70 = vpop.trf.xlu0
  %v71 = vpop.trf.xlu0
  %v72 = vpop.trf.xlu0
  %v73 = vpop.trf.xlu0
  %v74 = vpop.trf.xlu0
  %v75 = vpop.trf.xlu0
  %v76 = vpop.trf.xlu0
  %v77 = vpop.trf.xlu0
  %v78 = vpop.trf.xlu0
  %v79 = vpop.trf.xlu0
  %v80 = vpop.trf.xlu0
  %v81 = vpop.trf.xlu0
  %v82 = vadd.f32 %v13, %v66
  %v83 = vmul.f32 %v82, 0.5
  %v84 = vadd.f32 %v49, %v83
  %85 = vxpose.xlu0.b32.start [1/16] %v12, 128
  %86 = vxpose.xlu0.b32.cont [2/16] 0.0, 128
  %87 = vxpose.xlu0.b32.cont [3/16] 0.0, 128
  %88 = vxpose.xlu0.b32.cont [4/16] 0.0, 128
  %89 = vxpose.xlu0.b32.cont [5/16] 0.0, 128
  %90 = vxpose.xlu0.b32.cont [6/16] 0.0, 128
  %91 = vxpose.xlu0.b32.cont [7/16] 0.0, 128
  %92 = vxpose.xlu0.b32.cont [8/16] 0.0, 128
  %93 = vxpose.xlu0.b32.cont [9/16] 0.0, 128
  %94 = vxpose.xlu0.b32.cont [10/16] 0.0, 128
  %95 = vxpose.xlu0.b32.cont [11/16] 0.0, 128
  %96 = vxpose.xlu0.b32.cont [12/16] 0.0, 128
  %97 = vxpose.xlu0.b32.cont [13/16] 0.0, 128
  %98 = vxpose.xlu0.b32.cont [14/16] 0.0, 128
  %99 = vxpose.xlu0.b32.cont [15/16] 0.0, 128
  %100 = vxpose.xlu0.b32.end [16/16] 0.0, 128
  %v101 = vpop.trf.xlu0
  %v102 = vpop.trf.xlu0
  %v103 = vpop.trf.xlu0
  %v104 = vpop.trf.xlu0
  %v105 = vpop.trf.xlu0
  %v106 = vpop.trf.xlu0
  %v107 = vpop.trf.xlu0
  %v108 = vpop.trf.xlu0
  %v109 = vpop.trf.xlu0
  %v110 = vpop.trf.xlu0
  %v111 = vpop.trf.xlu0
  %v112 = vpop.trf.xlu0
  %v113 = vpop.trf.xlu0
  %v114 = vpop.trf.xlu0
  %v115 = vpop.trf.xlu0
  %v116 = vpop.trf.xlu0
  %v117 = vsub.f32 %v12, %v101
  %v118 = vmul.f32 %v117, 0.5
  %119 = vxpose.xlu0.b32.start [1/16] %v15, 128
  %120 = vxpose.xlu0.b32.cont [2/16] 0.0, 128
  %121 = vxpose.xlu0.b32.cont [3/16] 0.0, 128
  %122 = vxpose.xlu0.b32.cont [4/16] 0.0, 128
  %123 = vxpose.xlu0.b32.cont [5/16] 0.0, 128
  %124 = vxpose.xlu0.b32.cont [6/16] 0.0, 128
  %125 = vxpose.xlu0.b32.cont [7/16] 0.0, 128
  %126 = vxpose.xlu0.b32.cont [8/16] 0.0, 128
  %127 = vxpose.xlu0.b32.cont [9/16] 0.0, 128
  %128 = vxpose.xlu0.b32.cont [10/16] 0.0, 128
  %129 = vxpose.xlu0.b32.cont [11/16] 0.0, 128
  %130 = vxpose.xlu0.b32.cont [12/16] 0.0, 128
  %131 = vxpose.xlu0.b32.cont [13/16] 0.0, 128
  %132 = vxpose.xlu0.b32.cont [14/16] 0.0, 128
  %133 = vxpose.xlu0.b32.cont [15/16] 0.0, 128
  %134 = vxpose.xlu0.b32.end [16/16] 0.0, 128
  %v135 = vpop.trf.xlu0
  %v136 = vpop.trf.xlu0
  %v137 = vpop.trf.xlu0
  %v138 = vpop.trf.xlu0
  %v139 = vpop.trf.xlu0
  %v140 = vpop.trf.xlu0
  %v141 = vpop.trf.xlu0
  %v142 = vpop.trf.xlu0
  %v143 = vpop.trf.xlu0
  %v144 = vpop.trf.xlu0
  %v145 = vpop.trf.xlu0
  %v146 = vpop.trf.xlu0
  %v147 = vpop.trf.xlu0
  %v148 = vpop.trf.xlu0
  %v149 = vpop.trf.xlu0
  %v150 = vpop.trf.xlu0
  %v151 = vsub.f32 %v15, %v135
  %v152 = vmul.f32 %v151, 0.5
  %v153 = vadd.f32 %v118, %v152
  %s154 = scalar_lea.vmem %s0, 16
  %v155 = vld [vmem:[%s154] sm:$0xff]
  %v156 = vld [vmem:[%s154 + $0x8] sm:$0xff]
  %s157 = scalar_lea.vmem %s1, 16
  %v158 = vld [vmem:[%s157] sm:$0xff]
  %s159 = scalar_lea.vmem %s1, 24
  %v160 = vld [vmem:[%s159] sm:$0xff]
  %161 = vxpose.xlu0.b32.start [1/16] %v155, 128
  %162 = vxpose.xlu0.b32.cont [2/16] 0.0, 128
  %163 = vxpose.xlu0.b32.cont [3/16] 0.0, 128
  %164 = vxpose.xlu0.b32.cont [4/16] 0.0, 128
  %165 = vxpose.xlu0.b32.cont [5/16] 0.0, 128
  %166 = vxpose.xlu0.b32.cont [6/16] 0.0, 128
  %167 = vxpose.xlu0.b32.cont [7/16] 0.0, 128
  %168 = vxpose.xlu0.b32.cont [8/16] 0.0, 128
  %169 = vxpose.xlu0.b32.cont [9/16] 0.0, 128
  %170 = vxpose.xlu0.b32.cont [10/16] 0.0, 128
  %171 = vxpose.xlu0.b32.cont [11/16] 0.0, 128
  %172 = vxpose.xlu0.b32.cont [12/16] 0.0, 128
  %173 = vxpose.xlu0.b32.cont [13/16] 0.0, 128
  %174 = vxpose.xlu0.b32.cont [14/16] 0.0, 128
  %175 = vxpose.xlu0.b32.cont [15/16] 0.0, 128
  %176 = vxpose.xlu0.b32.end [16/16] 0.0, 128
  %v177 = vpop.trf.xlu0
  %v178 = vpop.trf.xlu0
  %v179 = vpop.trf.xlu0
  %v180 = vpop.trf.xlu0
  %v181 = vpop.trf.xlu0
  %v182 = vpop.trf.xlu0
  %v183 = vpop.trf.xlu0
  %v184 = vpop.trf.xlu0
  %v185 = vpop.trf.xlu0
  %v186 = vpop.trf.xlu0
  %v187 = vpop.trf.xlu0
  %v188 = vpop.trf.xlu0
  %v189 = vpop.trf.xlu0
  %v190 = vpop.trf.xlu0
  %v191 = vpop.trf.xlu0
  %v192 = vpop.trf.xlu0
  %v193 = vadd.f32 %v155, %v177
  %v194 = vmul.f32 %v193, 0.5
  %195 = vxpose.xlu0.b32.start [1/16] %v158, 128
  %196 = vxpose.xlu0.b32.cont [2/16] 0.0, 128
  %197 = vxpose.xlu0.b32.cont [3/16] 0.0, 128
  %198 = vxpose.xlu0.b32.cont [4/16] 0.0, 128
  %199 = vxpose.xlu0.b32.cont [5/16] 0.0, 128
  %200 = vxpose.xlu0.b32.cont [6/16] 0.0, 128
  %201 = vxpose.xlu0.b32.cont [7/16] 0.0, 128
  %202 = vxpose.xlu0.b32.cont [8/16] 0.0, 128
  %203 = vxpose.xlu0.b32.cont [9/16] 0.0, 128
  %204 = vxpose.xlu0.b32.cont [10/16] 0.0, 128
  %205 = vxpose.xlu0.b32.cont [11/16] 0.0, 128
  %206 = vxpose.xlu0.b32.cont [12/16] 0.0, 128
  %207 = vxpose.xlu0.b32.cont [13/16] 0.0, 128
  %208 = vxpose.xlu0.b32.cont [14/16] 0.0, 128
  %209 = vxpose.xlu0.b32.cont [15/16] 0.0, 128
  %210 = vxpose.xlu0.b32.end [16/16] 0.0, 128
  %v211 = vpop.trf.xlu0
  %v212 = vpop.trf.xlu0
  %v213 = vpop.trf.xlu0
  %v214 = vpop.trf.xlu0
  %v215 = vpop.trf.xlu0
  %v216 = vpop.trf.xlu0
  %v217 = vpop.trf.xlu0
  %v218 = vpop.trf.xlu0
  %v219 = vpop.trf.xlu0
  %v220 = vpop.trf.xlu0
  %v221 = vpop.trf.xlu0
  %v222 = vpop.trf.xlu0
  %v223 = vpop.trf.xlu0
  %v224 = vpop.trf.xlu0
  %v225 = vpop.trf.xlu0
  %v226 = vpop.trf.xlu0
  %v227 = vadd.f32 %v158, %v211
  %v228 = vmul.f32 %v227, 0.5
  %v229 = vadd.f32 %v194, %v228
  %230 = vxpose.xlu0.b32.start [1/16] %v156, 128
  %231 = vxpose.xlu0.b32.cont [2/16] 0.0, 128
  %232 = vxpose.xlu0.b32.cont [3/16] 0.0, 128
  %233 = vxpose.xlu0.b32.cont [4/16] 0.0, 128
  %234 = vxpose.xlu0.b32.cont [5/16] 0.0, 128
  %235 = vxpose.xlu0.b32.cont [6/16] 0.0, 128
  %236 = vxpose.xlu0.b32.cont [7/16] 0.0, 128
  %237 = vxpose.xlu0.b32.cont [8/16] 0.0, 128
  %238 = vxpose.xlu0.b32.cont [9/16] 0.0, 128
  %239 = vxpose.xlu0.b32.cont [10/16] 0.0, 128
  %240 = vxpose.xlu0.b32.cont [11/16] 0.0, 128
  %241 = vxpose.xlu0.b32.cont [12/16] 0.0, 128
  %242 = vxpose.xlu0.b32.cont [13/16] 0.0, 128
  %243 = vxpose.xlu0.b32.cont [14/16] 0.0, 128
  %244 = vxpose.xlu0.b32.cont [15/16] 0.0, 128
  %245 = vxpose.xlu0.b32.end [16/16] 0.0, 128
  %v246 = vpop.trf.xlu0
  %v247 = vpop.trf.xlu0
  %v248 = vpop.trf.xlu0
  %v249 = vpop.trf.xlu0
  %v250 = vpop.trf.xlu0
  %v251 = vpop.trf.xlu0
  %v252 = vpop.trf.xlu0
  %v253 = vpop.trf.xlu0
  %v254 = vpop.trf.xlu0
  %v255 = vpop.trf.xlu0
  %v256 = vpop.trf.xlu0
  %v257 = vpop.trf.xlu0
  %v258 = vpop.trf.xlu0
  %v259 = vpop.trf.xlu0
  %v260 = vpop.trf.xlu0
  %v261 = vpop.trf.xlu0
  %v262 = vsub.f32 %v156, %v246
  %v263 = vmul.f32 %v262, 0.5
  %264 = vxpose.xlu0.b32.start [1/16] %v160, 128
  %265 = vxpose.xlu0.b32.cont [2/16] 0.0, 128
  %266 = vxpose.xlu0.b32.cont [3/16] 0.0, 128
  %267 = vxpose.xlu0.b32.cont [4/16] 0.0, 128
  %268 = vxpose.xlu0.b32.cont [5/16] 0.0, 128
  %269 = vxpose.xlu0.b32.cont [6/16] 0.0, 128
  %270 = vxpose.xlu0.b32.cont [7/16] 0.0, 128
  %271 = vxpose.xlu0.b32.cont [8/16] 0.0, 128
  %272 = vxpose.xlu0.b32.cont [9/16] 0.0, 128
  %273 = vxpose.xlu0.b32.cont [10/16] 0.0, 128
  %274 = vxpose.xlu0.b32.cont [11/16] 0.0, 128
  %275 = vxpose.xlu0.b32.cont [12/16] 0.0, 128
  %276 = vxpose.xlu0.b32.cont [13/16] 0.0, 128
  %277 = vxpose.xlu0.b32.cont [14/16] 0.0, 128
  %278 = vxpose.xlu0.b32.cont [15/16] 0.0, 128
  %279 = vxpose.xlu0.b32.end [16/16] 0.0, 128
  %v280 = vpop.trf.xlu0
  %v281 = vpop.trf.xlu0
  %v282 = vpop.trf.xlu0
  %v283 = vpop.trf.xlu0
  %v284 = vpop.trf.xlu0
  %v285 = vpop.trf.xlu0
  %v286 = vpop.trf.xlu0
  %v287 = vpop.trf.xlu0
  %v288 = vpop.trf.xlu0
  %v289 = vpop.trf.xlu0
  %v290 = vpop.trf.xlu0
  %v291 = vpop.trf.xlu0
  %v292 = vpop.trf.xlu0
  %v293 = vpop.trf.xlu0
  %v294 = vpop.trf.xlu0
  %v295 = vpop.trf.xlu0
  %v296 = vsub.f32 %v160, %v280
  %v297 = vmul.f32 %v296, 0.5
  %v298 = vadd.f32 %v263, %v297
  %s299 = scalar_lea.vmem %s0, 32
  %v300 = vld [vmem:[%s299] sm:$0xff]
  %v301 = vld [vmem:[%s299 + $0x8] sm:$0xff]
  %s302 = scalar_lea.vmem %s1, 32
  %v303 = vld [vmem:[%s302] sm:$0xff]
  %s304 = scalar_lea.vmem %s1, 40
  %v305 = vld [vmem:[%s304] sm:$0xff]
  %306 = vxpose.xlu0.b32.start [1/16] %v300, 128
  %307 = vxpose.xlu0.b32.cont [2/16] 0.0, 128
  %308 = vxpose.xlu0.b32.cont [3/16] 0.0, 128
  %309 = vxpose.xlu0.b32.cont [4/16] 0.0, 128
  %310 = vxpose.xlu0.b32.cont [5/16] 0.0, 128
  %311 = vxpose.xlu0.b32.cont [6/16] 0.0, 128
  %312 = vxpose.xlu0.b32.cont [7/16] 0.0, 128
  %313 = vxpose.xlu0.b32.cont [8/16] 0.0, 128
  %314 = vxpose.xlu0.b32.cont [9/16] 0.0, 128
  %315 = vxpose.xlu0.b32.cont [10/16] 0.0, 128
  %316 = vxpose.xlu0.b32.cont [11/16] 0.0, 128
  %317 = vxpose.xlu0.b32.cont [12/16] 0.0, 128
  %318 = vxpose.xlu0.b32.cont [13/16] 0.0, 128
  %319 = vxpose.xlu0.b32.cont [14/16] 0.0, 128
  %320 = vxpose.xlu0.b32.cont [15/16] 0.0, 128
  %321 = vxpose.xlu0.b32.end [16/16] 0.0, 128
  %v322 = vpop.trf.xlu0
  %v323 = vpop.trf.xlu0
  %v324 = vpop.trf.xlu0
  %v325 = vpop.trf.xlu0
  %v326 = vpop.trf.xlu0
  %v327 = vpop.trf.xlu0
  %v328 = vpop.trf.xlu0
  %v329 = vpop.trf.xlu0
  %v330 = vpop.trf.xlu0
  %v331 = vpop.trf.xlu0
  %v332 = vpop.trf.xlu0
  %v333 = vpop.trf.xlu0
  %v334 = vpop.trf.xlu0
  %v335 = vpop.trf.xlu0
  %v336 = vpop.trf.xlu0
  %v337 = vpop.trf.xlu0
  %v338 = vadd.f32 %v300, %v322
  %v339 = vmul.f32 %v338, 0.5
  %340 = vxpose.xlu0.b32.start [1/16] %v303, 128
  %341 = vxpose.xlu0.b32.cont [2/16] 0.0, 128
  %342 = vxpose.xlu0.b32.cont [3/16] 0.0, 128
  %343 = vxpose.xlu0.b32.cont [4/16] 0.0, 128
  %344 = vxpose.xlu0.b32.cont [5/16] 0.0, 128
  %345 = vxpose.xlu0.b32.cont [6/16] 0.0, 128
  %346 = vxpose.xlu0.b32.cont [7/16] 0.0, 128
  %347 = vxpose.xlu0.b32.cont [8/16] 0.0, 128
  %348 = vxpose.xlu0.b32.cont [9/16] 0.0, 128
  %349 = vxpose.xlu0.b32.cont [10/16] 0.0, 128
  %350 = vxpose.xlu0.b32.cont [11/16] 0.0, 128
  %351 = vxpose.xlu0.b32.cont [12/16] 0.0, 128
  %352 = vxpose.xlu0.b32.cont [13/16] 0.0, 128
  %353 = vxpose.xlu0.b32.cont [14/16] 0.0, 128
  %354 = vxpose.xlu0.b32.cont [15/16] 0.0, 128
  %355 = vxpose.xlu0.b32.end [16/16] 0.0, 128
  %v356 = vpop.trf.xlu0
  %v357 = vpop.trf.xlu0
  %v358 = vpop.trf.xlu0
  %v359 = vpop.trf.xlu0
  %v360 = vpop.trf.xlu0
  %v361 = vpop.trf.xlu0
  %v362 = vpop.trf.xlu0
  %v363 = vpop.trf.xlu0
  %v364 = vpop.trf.xlu0
  %v365 = vpop.trf.xlu0
  %v366 = vpop.trf.xlu0
  %v367 = vpop.trf.xlu0
  %v368 = vpop.trf.xlu0
  %v369 = vpop.trf.xlu0
  %v370 = vpop.trf.xlu0
  %v371 = vpop.trf.xlu0
  %v372 = vadd.f32 %v303, %v356
  %v373 = vmul.f32 %v372, 0.5
  %v374 = vadd.f32 %v339, %v373
  %375 = vxpose.xlu0.b32.start [1/16] %v301, 128
  %376 = vxpose.xlu0.b32.cont [2/16] 0.0, 128
  %377 = vxpose.xlu0.b32.cont [3/16] 0.0, 128
  %378 = vxpose.xlu0.b32.cont [4/16] 0.0, 128
  %379 = vxpose.xlu0.b32.cont [5/16] 0.0, 128
  %380 = vxpose.xlu0.b32.cont [6/16] 0.0, 128
  %381 = vxpose.xlu0.b32.cont [7/16] 0.0, 128
  %382 = vxpose.xlu0.b32.cont [8/16] 0.0, 128
  %383 = vxpose.xlu0.b32.cont [9/16] 0.0, 128
  %384 = vxpose.xlu0.b32.cont [10/16] 0.0, 128
  %385 = vxpose.xlu0.b32.cont [11/16] 0.0, 128
  %386 = vxpose.xlu0.b32.cont [12/16] 0.0, 128
  %387 = vxpose.xlu0.b32.cont [13/16] 0.0, 128
  %388 = vxpose.xlu0.b32.cont [14/16] 0.0, 128
  %389 = vxpose.xlu0.b32.cont [15/16] 0.0, 128
  %390 = vxpose.xlu0.b32.end [16/16] 0.0, 128
  %v391 = vpop.trf.xlu0
  %v392 = vpop.trf.xlu0
  %v393 = vpop.trf.xlu0
  %v394 = vpop.trf.xlu0
  %v395 = vpop.trf.xlu0
  %v396 = vpop.trf.xlu0
  %v397 = vpop.trf.xlu0
  %v398 = vpop.trf.xlu0
  %v399 = vpop.trf.xlu0
  %v400 = vpop.trf.xlu0
  %v401 = vpop.trf.xlu0
  %v402 = vpop.trf.xlu0
  %v403 = vpop.trf.xlu0
  %v404 = vpop.trf.xlu0
  %v405 = vpop.trf.xlu0
  %v406 = vpop.trf.xlu0
  %v407 = vsub.f32 %v301, %v391
  %v408 = vmul.f32 %v407, 0.5
  %409 = vxpose.xlu0.b32.start [1/16] %v305, 128
  %410 = vxpose.xlu0.b32.cont [2/16] 0.0, 128
  %411 = vxpose.xlu0.b32.cont [3/16] 0.0, 128
  %412 = vxpose.xlu0.b32.cont [4/16] 0.0, 128
  %413 = vxpose.xlu0.b32.cont [5/16] 0.0, 128
  %414 = vxpose.xlu0.b32.cont [6/16] 0.0, 128
  %415 = vxpose.xlu0.b32.cont [7/16] 0.0, 128
  %416 = vxpose.xlu0.b32.cont [8/16] 0.0, 128
  %417 = vxpose.xlu0.b32.cont [9/16] 0.0, 128
  %418 = vxpose.xlu0.b32.cont [10/16] 0.0, 128
  %419 = vxpose.xlu0.b32.cont [11/16] 0.0, 128
  %420 = vxpose.xlu0.b32.cont [12/16] 0.0, 128
  %421 = vxpose.xlu0.b32.cont [13/16] 0.0, 128
  %422 = vxpose.xlu0.b32.cont [14/16] 0.0, 128
  %423 = vxpose.xlu0.b32.cont [15/16] 0.0, 128
  %424 = vxpose.xlu0.b32.end [16/16] 0.0, 128
  %v425 = vpop.trf.xlu0
  %v426 = vpop.trf.xlu0
  %v427 = vpop.trf.xlu0
  %v428 = vpop.trf.xlu0
  %v429 = vpop.trf.xlu0
  %v430 = vpop.trf.xlu0
  %v431 = vpop.trf.xlu0
  %v432 = vpop.trf.xlu0
  %v433 = vpop.trf.xlu0
  %v434 = vpop.trf.xlu0
  %v435 = vpop.trf.xlu0
  %v436 = vpop.trf.xlu0
  %v437 = vpop.trf.xlu0
  %v438 = vpop.trf.xlu0
  %v439 = vpop.trf.xlu0
  %v440 = vpop.trf.xlu0
  %v441 = vsub.f32 %v305, %v425
  %v442 = vmul.f32 %v441, 0.5
  %v443 = vadd.f32 %v408, %v442
  %s444 = scalar_lea.vmem %s0, 48
  %v445 = vld [vmem:[%s444] sm:$0xff]
  %v446 = vld [vmem:[%s444 + $0x8] sm:$0xff]
  %s447 = scalar_lea.vmem %s1, 48
  %v448 = vld [vmem:[%s447] sm:$0xff]
  %s449 = scalar_lea.vmem %s1, 56
  %v450 = vld [vmem:[%s449] sm:$0xff]
  %451 = vxpose.xlu0.b32.start [1/16] %v445, 128
  %452 = vxpose.xlu0.b32.cont [2/16] 0.0, 128
  %453 = vxpose.xlu0.b32.cont [3/16] 0.0, 128
  %454 = vxpose.xlu0.b32.cont [4/16] 0.0, 128
  %455 = vxpose.xlu0.b32.cont [5/16] 0.0, 128
  %456 = vxpose.xlu0.b32.cont [6/16] 0.0, 128
  %457 = vxpose.xlu0.b32.cont [7/16] 0.0, 128
  %458 = vxpose.xlu0.b32.cont [8/16] 0.0, 128
  %459 = vxpose.xlu0.b32.cont [9/16] 0.0, 128
  %460 = vxpose.xlu0.b32.cont [10/16] 0.0, 128
  %461 = vxpose.xlu0.b32.cont [11/16] 0.0, 128
  %462 = vxpose.xlu0.b32.cont [12/16] 0.0, 128
  %463 = vxpose.xlu0.b32.cont [13/16] 0.0, 128
  %464 = vxpose.xlu0.b32.cont [14/16] 0.0, 128
  %465 = vxpose.xlu0.b32.cont [15/16] 0.0, 128
  %466 = vxpose.xlu0.b32.end [16/16] 0.0, 128
  %v467 = vpop.trf.xlu0
  %v468 = vpop.trf.xlu0
  %v469 = vpop.trf.xlu0
  %v470 = vpop.trf.xlu0
  %v471 = vpop.trf.xlu0
  %v472 = vpop.trf.xlu0
  %v473 = vpop.trf.xlu0
  %v474 = vpop.trf.xlu0
  %v475 = vpop.trf.xlu0
  %v476 = vpop.trf.xlu0
  %v477 = vpop.trf.xlu0
  %v478 = vpop.trf.xlu0
  %v479 = vpop.trf.xlu0
  %v480 = vpop.trf.xlu0
  %v481 = vpop.trf.xlu0
  %v482 = vpop.trf.xlu0
  %v483 = vadd.f32 %v445, %v467
  %v484 = vmul.f32 %v483, 0.5
  %485 = vxpose.xlu0.b32.start [1/16] %v448, 128
  %486 = vxpose.xlu0.b32.cont [2/16] 0.0, 128
  %487 = vxpose.xlu0.b32.cont [3/16] 0.0, 128
  %488 = vxpose.xlu0.b32.cont [4/16] 0.0, 128
  %489 = vxpose.xlu0.b32.cont [5/16] 0.0, 128
  %490 = vxpose.xlu0.b32.cont [6/16] 0.0, 128
  %491 = vxpose.xlu0.b32.cont [7/16] 0.0, 128
  %492 = vxpose.xlu0.b32.cont [8/16] 0.0, 128
  %493 = vxpose.xlu0.b32.cont [9/16] 0.0, 128
  %494 = vxpose.xlu0.b32.cont [10/16] 0.0, 128
  %495 = vxpose.xlu0.b32.cont [11/16] 0.0, 128
  %496 = vxpose.xlu0.b32.cont [12/16] 0.0, 128
  %497 = vxpose.xlu0.b32.cont [13/16] 0.0, 128
  %498 = vxpose.xlu0.b32.cont [14/16] 0.0, 128
  %499 = vxpose.xlu0.b32.cont [15/16] 0.0, 128
  %500 = vxpose.xlu0.b32.end [16/16] 0.0, 128
  %v501 = vpop.trf.xlu0
  %v502 = vpop.trf.xlu0
  %v503 = vpop.trf.xlu0
  %v504 = vpop.trf.xlu0
  %v505 = vpop.trf.xlu0
  %v506 = vpop.trf.xlu0
  %v507 = vpop.trf.xlu0
  %v508 = vpop.trf.xlu0
  %v509 = vpop.trf.xlu0
  %v510 = vpop.trf.xlu0
  %v511 = vpop.trf.xlu0
  %v512 = vpop.trf.xlu0
  %v513 = vpop.trf.xlu0
  %v514 = vpop.trf.xlu0
  %v515 = vpop.trf.xlu0
  %v516 = vpop.trf.xlu0
  %v517 = vadd.f32 %v448, %v501
  %v518 = vmul.f32 %v517, 0.5
  %v519 = vadd.f32 %v484, %v518
  %520 = vxpose.xlu0.b32.start [1/16] %v446, 128
  %521 = vxpose.xlu0.b32.cont [2/16] 0.0, 128
  %522 = vxpose.xlu0.b32.cont [3/16] 0.0, 128
  %523 = vxpose.xlu0.b32.cont [4/16] 0.0, 128
  %524 = vxpose.xlu0.b32.cont [5/16] 0.0, 128
  %525 = vxpose.xlu0.b32.cont [6/16] 0.0, 128
  %526 = vxpose.xlu0.b32.cont [7/16] 0.0, 128
  %527 = vxpose.xlu0.b32.cont [8/16] 0.0, 128
  %528 = vxpose.xlu0.b32.cont [9/16] 0.0, 128
  %529 = vxpose.xlu0.b32.cont [10/16] 0.0, 128
  %530 = vxpose.xlu0.b32.cont [11/16] 0.0, 128
  %531 = vxpose.xlu0.b32.cont [12/16] 0.0, 128
  %532 = vxpose.xlu0.b32.cont [13/16] 0.0, 128
  %533 = vxpose.xlu0.b32.cont [14/16] 0.0, 128
  %534 = vxpose.xlu0.b32.cont [15/16] 0.0, 128
  %535 = vxpose.xlu0.b32.end [16/16] 0.0, 128
  %v536 = vpop.trf.xlu0
  %v537 = vpop.trf.xlu0
  %v538 = vpop.trf.xlu0
  %v539 = vpop.trf.xlu0
  %v540 = vpop.trf.xlu0
  %v541 = vpop.trf.xlu0
  %v542 = vpop.trf.xlu0
  %v543 = vpop.trf.xlu0
  %v544 = vpop.trf.xlu0
  %v545 = vpop.trf.xlu0
  %v546 = vpop.trf.xlu0
  %v547 = vpop.trf.xlu0
  %v548 = vpop.trf.xlu0
  %v549 = vpop.trf.xlu0
  %v550 = vpop.trf.xlu0
  %v551 = vpop.trf.xlu0
  %v552 = vsub.f32 %v446, %v536
  %v553 = vmul.f32 %v552, 0.5
  %554 = vxpose.xlu0.b32.start [1/16] %v450, 128
  %555 = vxpose.xlu0.b32.cont [2/16] 0.0, 128
  %556 = vxpose.xlu0.b32.cont [3/16] 0.0, 128
  %557 = vxpose.xlu0.b32.cont [4/16] 0.0, 128
  %558 = vxpose.xlu0.b32.cont [5/16] 0.0, 128
  %559 = vxpose.xlu0.b32.cont [6/16] 0.0, 128
  %560 = vxpose.xlu0.b32.cont [7/16] 0.0, 128
  %561 = vxpose.xlu0.b32.cont [8/16] 0.0, 128
  %562 = vxpose.xlu0.b32.cont [9/16] 0.0, 128
  %563 = vxpose.xlu0.b32.cont [10/16] 0.0, 128
  %564 = vxpose.xlu0.b32.cont [11/16] 0.0, 128
  %565 = vxpose.xlu0.b32.cont [12/16] 0.0, 128
  %566 = vxpose.xlu0.b32.cont [13/16] 0.0, 128
  %567 = vxpose.xlu0.b32.cont [14/16] 0.0, 128
  %568 = vxpose.xlu0.b32.cont [15/16] 0.0, 128
  %569 = vxpose.xlu0.b32.end [16/16] 0.0, 128
  %v570 = vpop.trf.xlu0
  %v571 = vpop.trf.xlu0
  %v572 = vpop.trf.xlu0
  %v573 = vpop.trf.xlu0
  %v574 = vpop.trf.xlu0
  %v575 = vpop.trf.xlu0
  %v576 = vpop.trf.xlu0
  %v577 = vpop.trf.xlu0
  %v578 = vpop.trf.xlu0
  %v579 = vpop.trf.xlu0
  %v580 = vpop.trf.xlu0
  %v581 = vpop.trf.xlu0
  %v582 = vpop.trf.xlu0
  %v583 = vpop.trf.xlu0
  %v584 = vpop.trf.xlu0
  %v585 = vpop.trf.xlu0
  %v586 = vsub.f32 %v450, %v570
  %v587 = vmul.f32 %v586, 0.5
  %v588 = vadd.f32 %v553, %v587
  %590 = vrot.lane.b32.xlu0 %v229, 8
  %v591 = vpop.permute.xlu0 %590
  %594 = vrot.lane.b32.xlu0 %v374, 16
  %v595 = vpop.permute.xlu0 %594
  %598 = vrot.lane.b32.xlu0 %v519, 24
  %v599 = vpop.permute.xlu0 %598
  %602 = vrot.lane.b32.xlu0 %v153, 32
  %v603 = vpop.permute.xlu0 %602
  %606 = vrot.lane.b32.xlu0 %v298, 40
  %v607 = vpop.permute.xlu0 %606
  %610 = vrot.lane.b32.xlu0 %v443, 48
  %v611 = vpop.permute.xlu0 %610
  %614 = vrot.lane.b32.xlu0 %v588, 56
  %v615 = vpop.permute.xlu0 %614
  %vm617 = vcmask 64512
  %v618 = vsel %vm617, %v84, %v591
  %vm619 = vcmask 130048
  %v620 = vsel %vm619, %v618, %v595
  %vm621 = vcmask 195584
  %v622 = vsel %vm621, %v620, %v599
  %vm623 = vcmask 261120
  %v624 = vsel %vm623, %v622, %v603
  %vm625 = vcmask 326656
  %v626 = vsel %vm625, %v624, %v607
  %vm627 = vcmask 392192
  %v628 = vsel %vm627, %v626, %v611
  %vm629 = vcmask 457728
  %v630 = vsel %vm629, %v628, %v615
  %vm631 = vcmask 523264
  %632 = vst.msk [vmem:[%s2] sm:$0xff] %vm631, %v630
  // Predicated region
  $region10: #{w_unfolding_forward.1} parent=0 // pred_check
    _
  $region11: #{w_unfolding_forward.1} parent=0 // pred_check_branch
    %634 = sbr.rel (0) target = $region13
  $region12: #{w_unfolding_forward.1} parent=0 // pred_region
    _
  $region13: #{w_unfolding_forward.1} parent=0 // pred_fallthru
    _
  // Predicated region
  $region14: #{w_unfolding_forward.1} parent=0 // pred_check
    _
  $region15: #{w_unfolding_forward.1} parent=0 // pred_check_branch
    %636 = sbr.rel (0) target = $region17
  $region16: #{w_unfolding_forward.1} parent=0 // pred_region
    _
  $region17: #{w_unfolding_forward.1} parent=0 // pred_fallthru
    _

</llo_original>
